<compile_context>
chip_gen: v7x
topology: tpu7x:2x2x1
jax: 0.10.0
libtpu: 0.0.40
codegen_flags: <defaults>
</compile_context>

<pallas_src>
import jax
import jax.numpy as jnp
import numpy as np
from jax.experimental import pallas as pl
from jax.experimental.pallas import tpu as pltpu


# ----------------------------- Fused kernel -------------------------------- #
def make_rnn_kernel(n_layer, T, B, H):
    """Builds the fused (LSTM stack + classifier) kernel.

    Kernel ref layout (positional):
      x_ref                     : (T*B, in_dim)   time-major, rows t*B..t*B+B-1
      per layer l (3 refs each) : w_ih_t (D_l, 4H), w_hh_t (H, 4H), bias (1, 4H)
      wc_ref, bc_ref            : (H, O), (1, O)   classifier
      out_ref                   : (B, O)
    Gate ordering matches PyTorch: [i, f, g, o].
    """

    def kernel(*refs):
        x_ref = refs[0]
        lstm_refs = refs[1:1 + 3 * n_layer]
        wc_ref = refs[1 + 3 * n_layer]
        bc_ref = refs[2 + 3 * n_layer]
        out_ref = refs[3 + 3 * n_layer]

        # Hoist every weight/bias into vregs once, off the recurrent chain.
        w_ih = [lstm_refs[3 * l + 0][...] for l in range(n_layer)]   # (D_l, 4H)
        w_hh = [lstm_refs[3 * l + 1][...] for l in range(n_layer)]   # (H, 4H)
        bias = [lstm_refs[3 * l + 2][...] for l in range(n_layer)]   # (1, 4H)
        # Broadcasts hoisted out of the recurrence (JAX does not CSE them).
        bias_b = [jnp.broadcast_to(bias[l], (B, 4 * H)) for l in range(n_layer)]

        # Layer-0 input projection hoisted over the whole sequence:
        # one (T*B, D) @ (D, 4H) MXU matmul, bias folded in.  Sliced below
        # with static indices (value slices, no VMEM scratch round trip).
        g0_all = (
            jnp.dot(x_ref[...], w_ih[0], preferred_element_type=jnp.float32)
            + bias[0]
        )                                                            # (T*B, 4H)

        def cell(gin, h, c, l):
            """One LSTM cell: gin = input projection (bias included)."""
            gates = gin + jnp.dot(h, w_hh[l], preferred_element_type=jnp.float32)
            # Full-width nonlinearities: one sigmoid + one tanh pass over the
            # whole (B, 4H) tile, then cheap column slices.
            sig = jax.nn.sigmoid(gates)
            th = jnp.tanh(gates)
            i = sig[:, 0 * H:1 * H]
            f = sig[:, 1 * H:2 * H]
            g = th[:, 2 * H:3 * H]
            o = sig[:, 3 * H:4 * H]
            c_new = f * c + i * g
            h_new = o * jnp.tanh(c_new)
            return h_new, c_new

        zeros = jnp.zeros((B, H), jnp.float32)
        h = [zeros] * n_layer        # h[l] = layer l hidden at its latest time
        c = [zeros] * n_layer

        # Wavefront over (layer, time): step s computes layer l at t = s - l.
        # Within one step the per-layer cells are independent (their data deps
        # cross step boundaries), so their matmuls/EUP work overlap.
        for s in range(T + n_layer - 1):
            new_h = list(h)
            new_c = list(c)
            for l in range(n_layer):
                t = s - l
                if 0 <= t < T:
                    if l == 0:
                        gin = g0_all[t * B:(t + 1) * B, :]           # static slice
                    else:
                        # h[l-1] holds layer l-1's hidden at time t
                        # (produced at wavefront step s-1).
                        gin = (
                            jnp.dot(h[l - 1], w_ih[l],
                                    preferred_element_type=jnp.float32)
                            + bias_b[l]
                        )
                    new_h[l], new_c[l] = cell(gin, h[l], c[l], l)
            h, c = new_h, new_c

        # Classifier on the last layer's final hidden state, fused in.
        out_ref[...] = (
            jnp.dot(h[n_layer - 1], wc_ref[...],
                    preferred_element_type=jnp.float32)
            + bc_ref[...]
        ).astype(out_ref.dtype)

    return kernel


# ------------------------------ Wrapper ------------------------------------ #
def rnn_forward(x_btd, packed):
    """x_btd: (B, T, in_dim) -> (B, out_dim).  Matches Rnn.forward."""
    B, T, D = x_btd.shape
    n_layer = len(packed["lstm"])
    H = packed["lstm"][0][1].shape[0]          # w_hh_t: (H, 4H)
    O = packed["wc_t"].shape[1]

    # Time-major flatten (rows grouped by time step): (T*B, D).
    # Negligible (<= a few KiB) at these sizes; for large T*B*D have the
    # caller supply time-major data instead.
    x_flat = jnp.transpose(x_btd, (1, 0, 2)).reshape(T * B, D)

    inputs = [x_flat]
    for (w_ih_t, w_hh_t, b) in packed["lstm"]:
        inputs += [w_ih_t, w_hh_t, b]
    inputs += [packed["wc_t"], packed["bc"]]

    vmem_spec = pl.BlockSpec(memory_space=pltpu.MemorySpace.VMEM)
    return pl.pallas_call(
        make_rnn_kernel(n_layer, T, B, H),
        out_shape=jax.ShapeDtypeStruct((B, O), jnp.float32),
        in_specs=[vmem_spec] * len(inputs),
        out_specs=vmem_spec,
        # Explicit VMEM budget: the all-resident design uses <1 MiB here and
        # must stay under 64 MiB/TC on v7x (128 MiB on v5e/v6e) if scaled up.
        compiler_params=pltpu.CompilerParams(vmem_limit_bytes=32 * 1024 * 1024),
    )(*inputs)


# --------------------------- Parameter handling ----------------------------- #
def init_params(key, in_dim, hidden_dim, n_layer, out_dim):
    """Deterministic init mirroring PyTorch's U(-1/sqrt(H), 1/sqrt(H))."""
    params = {"lstm": [], "classifier": None}
    k = 1.0 / np.sqrt(hidden_dim)
    for layer in range(n_layer):
        d_in = in_dim if layer == 0 else hidden_dim
        key, k1, k2, k3, k4 = jax.random.split(key, 5)
        w_ih = jax.random.uniform(k1, (4 * hidden_dim, d_in), jnp.float32, -k, k)
        w_hh = jax.random.uniform(k2, (4 * hidden_dim, hidden_dim), jnp.float32, -k, k)
        b_ih = jax.random.uniform(k3, (4 * hidden_dim,), jnp.float32, -k, k)
        b_hh = jax.random.uniform(k4, (4 * hidden_dim,), jnp.float32, -k, k)
        params["lstm"].append((w_ih, w_hh, b_ih, b_hh))
    key, k1, k2 = jax.random.split(key, 3)
    w_cls = jax.random.uniform(k1, (out_dim, hidden_dim), jnp.float32, -k, k)
    b_cls = jax.random.uniform(k2, (out_dim,), jnp.float32, -k, k)
    params["classifier"] = (w_cls, b_cls)
    return params


def pack_params(params):
    """One-time layout prep: pre-transpose weights, combine biases."""
    packed = {"lstm": [], "wc_t": None, "bc": None}
    for (w_ih, w_hh, b_ih, b_hh) in params["lstm"]:
        packed["lstm"].append((
            jnp.transpose(w_ih),          # (D_in, 4H)
            jnp.transpose(w_hh),          # (H, 4H)
            (b_ih + b_hh)[None, :],       # (1, 4H)
        ))
    w_cls, b_cls = params["classifier"]
    packed["wc_t"] = jnp.transpose(w_cls)  # (H, O)
    packed["bc"] = b_cls[None, :]          # (1, O)
    return packed


# ---------------------------- Pure-JAX reference --------------------------- #
def rnn_reference(x_btd, params):
    B, T, _ = x_btd.shape
    x = x_btd
    for (w_ih, w_hh, b_ih, b_hh) in params["lstm"]:
        H = w_hh.shape[1]
        h = jnp.zeros((B, H), jnp.float32)
        c = jnp.zeros((B, H), jnp.float32)
        outs = []
        for t in range(T):
            gates = x[:, t, :] @ w_ih.T + b_ih + h @ w_hh.T + b_hh
            i = jax.nn.sigmoid(gates[:, 0 * H:1 * H])
            f = jax.nn.sigmoid(gates[:, 1 * H:2 * H])
            g = jnp.tanh(gates[:, 2 * H:3 * H])
            o = jax.nn.sigmoid(gates[:, 3 * H:4 * H])
            c = f * c + i * g
            h = o * jnp.tanh(c)
            outs.append(h)
        x = jnp.stack(outs, axis=1)
    w, b = params["classifier"]
    return x[:, -1, :] @ w.T + b


# --------------------------------- Main ------------------------------------ #
if __name__ == "__main__":
    B, T = 8, 8
    in_dim, hidden_dim, n_layer, out_dim = 16, 32, 2, 8

    key = jax.random.PRNGKey(0)
    key, kx = jax.random.split(key)
    x = jax.random.normal(kx, (B, T, in_dim), jnp.float32)
    params = init_params(key, in_dim, hidden_dim, n_layer, out_dim)
    packed = pack_params(params)

    fwd = jax.jit(rnn_forward)
    out = jax.block_until_ready(fwd(x, packed))
    ref = jax.block_until_ready(rnn_reference(x, params))

    assert out.shape == (B, out_dim), out.shape
    np.testing.assert_allclose(np.asarray(out), np.asarray(ref), rtol=1e-5, atol=1e-5)
    print("KERNEL_OK")
</pallas_src>

<mosaic_0001>
module attributes {stable_mosaic.version = 11 : i64} {
  func.func @kernel(%arg0: memref<64x16xf32, #tpu.memory_space<vmem>>, %arg1: memref<16x128xf32, #tpu.memory_space<vmem>>, %arg2: memref<32x128xf32, #tpu.memory_space<vmem>>, %arg3: memref<1x128xf32, #tpu.memory_space<vmem>>, %arg4: memref<32x128xf32, #tpu.memory_space<vmem>>, %arg5: memref<32x128xf32, #tpu.memory_space<vmem>>, %arg6: memref<1x128xf32, #tpu.memory_space<vmem>>, %arg7: memref<32x8xf32, #tpu.memory_space<vmem>>, %arg8: memref<1x8xf32, #tpu.memory_space<vmem>>, %arg9: memref<8x8xf32, #tpu.memory_space<vmem>>) attributes {dimension_semantics = [], scalar_prefetch = 0 : i64, scratch_operands = 0 : i64, tpu.core_type = #tpu.core_type<tc>} {
    %c0 = arith.constant 0 : index
    %c0_0 = arith.constant 0 : index
    %0 = vector.load %arg1[%c0, %c0_0] : memref<16x128xf32, #tpu.memory_space<vmem>>, vector<16x128xf32>
    %c0_1 = arith.constant 0 : index
    %c0_2 = arith.constant 0 : index
    %1 = vector.load %arg4[%c0_1, %c0_2] : memref<32x128xf32, #tpu.memory_space<vmem>>, vector<32x128xf32>
    %c0_3 = arith.constant 0 : index
    %c0_4 = arith.constant 0 : index
    %2 = vector.load %arg2[%c0_3, %c0_4] : memref<32x128xf32, #tpu.memory_space<vmem>>, vector<32x128xf32>
    %c0_5 = arith.constant 0 : index
    %c0_6 = arith.constant 0 : index
    %3 = vector.load %arg5[%c0_5, %c0_6] : memref<32x128xf32, #tpu.memory_space<vmem>>, vector<32x128xf32>
    %c0_7 = arith.constant 0 : index
    %c0_8 = arith.constant 0 : index
    %4 = vector.load %arg3[%c0_7, %c0_8] : memref<1x128xf32, #tpu.memory_space<vmem>>, vector<1x128xf32>
    %c0_9 = arith.constant 0 : index
    %c0_10 = arith.constant 0 : index
    %5 = vector.load %arg6[%c0_9, %c0_10] : memref<1x128xf32, #tpu.memory_space<vmem>>, vector<1x128xf32>
    %6 = vector.shape_cast %5 : vector<1x128xf32> to vector<1x128xf32>
    %7 = vector.broadcast %6 : vector<1x128xf32> to vector<8x128xf32>
    %c0_11 = arith.constant 0 : index
    %c0_12 = arith.constant 0 : index
    %8 = vector.load %arg0[%c0_11, %c0_12] : memref<64x16xf32, #tpu.memory_space<vmem>>, vector<64x16xf32>
    %cst = arith.constant dense<0.000000e+00> : vector<64x128xf32>
    %9 = tpu.matmul %8, %0, %cst {dimension_numbers = #tpu.dot_dimension_numbers<[1], [0], [0], [1], [0, 0, 1, 1], [], []>} : vector<64x16xf32>, vector<16x128xf32>, vector<64x128xf32> -> vector<64x128xf32>
    %10 = vector.broadcast %4 : vector<1x128xf32> to vector<64x128xf32>
    %11 = arith.addf %9, %10 : vector<64x128xf32>
    %cst_13 = arith.constant 0.000000e+00 : f32
    %12 = vector.broadcast %cst_13 : f32 to vector<8x32xf32>
    %13 = vector.extract_strided_slice %11 {offsets = [0, 0], sizes = [8, 128], strides = [1, 1]} : vector<64x128xf32> to vector<8x128xf32>
    %cst_14 = arith.constant dense<0.000000e+00> : vector<8x128xf32>
    %14 = tpu.matmul %12, %2, %cst_14 {dimension_numbers = #tpu.dot_dimension_numbers<[1], [0], [0], [1], [0, 0, 1, 1], [], []>} : vector<8x32xf32>, vector<32x128xf32>, vector<8x128xf32> -> vector<8x128xf32>
    %15 = arith.addf %13, %14 : vector<8x128xf32>
    %16 = arith.negf %15 : vector<8x128xf32>
    %17 = math.exp %16 : vector<8x128xf32>
    %cst_15 = arith.constant 1.000000e+00 : f32
    %18 = vector.broadcast %cst_15 : f32 to vector<8x128xf32>
    %19 = arith.addf %18, %17 : vector<8x128xf32>
    %20 = arith.divf %18, %19 : vector<8x128xf32>
    %21 = math.tanh %15 : vector<8x128xf32>
    %22 = vector.extract_strided_slice %20 {offsets = [0, 0], sizes = [8, 32], strides = [1, 1]} : vector<8x128xf32> to vector<8x32xf32>
    %23 = vector.extract_strided_slice %20 {offsets = [0, 32], sizes = [8, 32], strides = [1, 1]} : vector<8x128xf32> to vector<8x32xf32>
    %24 = vector.extract_strided_slice %21 {offsets = [0, 64], sizes = [8, 32], strides = [1, 1]} : vector<8x128xf32> to vector<8x32xf32>
    %25 = vector.extract_strided_slice %20 {offsets = [0, 96], sizes = [8, 32], strides = [1, 1]} : vector<8x128xf32> to vector<8x32xf32>
    %26 = arith.mulf %23, %12 : vector<8x32xf32>
    %27 = arith.mulf %22, %24 : vector<8x32xf32>
    %28 = arith.addf %26, %27 : vector<8x32xf32>
    %29 = math.tanh %28 : vector<8x32xf32>
    %30 = arith.mulf %25, %29 : vector<8x32xf32>
    %31 = vector.extract_strided_slice %11 {offsets = [8, 0], sizes = [8, 128], strides = [1, 1]} : vector<64x128xf32> to vector<8x128xf32>
    %cst_16 = arith.constant dense<0.000000e+00> : vector<8x128xf32>
    %32 = tpu.matmul %30, %2, %cst_16 {dimension_numbers = #tpu.dot_dimension_numbers<[1], [0], [0], [1], [0, 0, 1, 1], [], []>} : vector<8x32xf32>, vector<32x128xf32>, vector<8x128xf32> -> vector<8x128xf32>
    %33 = arith.addf %31, %32 : vector<8x128xf32>
    %34 = arith.negf %33 : vector<8x128xf32>
    %35 = math.exp %34 : vector<8x128xf32>
    %cst_17 = arith.constant 1.000000e+00 : f32
    %36 = vector.broadcast %cst_17 : f32 to vector<8x128xf32>
    %37 = arith.addf %36, %35 : vector<8x128xf32>
    %38 = arith.divf %36, %37 : vector<8x128xf32>
    %39 = math.tanh %33 : vector<8x128xf32>
    %40 = vector.extract_strided_slice %38 {offsets = [0, 0], sizes = [8, 32], strides = [1, 1]} : vector<8x128xf32> to vector<8x32xf32>
    %41 = vector.extract_strided_slice %38 {offsets = [0, 32], sizes = [8, 32], strides = [1, 1]} : vector<8x128xf32> to vector<8x32xf32>
    %42 = vector.extract_strided_slice %39 {offsets = [0, 64], sizes = [8, 32], strides = [1, 1]} : vector<8x128xf32> to vector<8x32xf32>
    %43 = vector.extract_strided_slice %38 {offsets = [0, 96], sizes = [8, 32], strides = [1, 1]} : vector<8x128xf32> to vector<8x32xf32>
    %44 = arith.mulf %41, %28 : vector<8x32xf32>
    %45 = arith.mulf %40, %42 : vector<8x32xf32>
    %46 = arith.addf %44, %45 : vector<8x32xf32>
    %47 = math.tanh %46 : vector<8x32xf32>
    %48 = arith.mulf %43, %47 : vector<8x32xf32>
    %cst_18 = arith.constant dense<0.000000e+00> : vector<8x128xf32>
    %49 = tpu.matmul %30, %1, %cst_18 {dimension_numbers = #tpu.dot_dimension_numbers<[1], [0], [0], [1], [0, 0, 1, 1], [], []>} : vector<8x32xf32>, vector<32x128xf32>, vector<8x128xf32> -> vector<8x128xf32>
    %50 = arith.addf %49, %7 : vector<8x128xf32>
    %cst_19 = arith.constant dense<0.000000e+00> : vector<8x128xf32>
    %51 = tpu.matmul %12, %3, %cst_19 {dimension_numbers = #tpu.dot_dimension_numbers<[1], [0], [0], [1], [0, 0, 1, 1], [], []>} : vector<8x32xf32>, vector<32x128xf32>, vector<8x128xf32> -> vector<8x128xf32>
    %52 = arith.addf %50, %51 : vector<8x128xf32>
    %53 = arith.negf %52 : vector<8x128xf32>
    %54 = math.exp %53 : vector<8x128xf32>
    %cst_20 = arith.constant 1.000000e+00 : f32
    %55 = vector.broadcast %cst_20 : f32 to vector<8x128xf32>
    %56 = arith.addf %55, %54 : vector<8x128xf32>
    %57 = arith.divf %55, %56 : vector<8x128xf32>
    %58 = math.tanh %52 : vector<8x128xf32>
    %59 = vector.extract_strided_slice %57 {offsets = [0, 0], sizes = [8, 32], strides = [1, 1]} : vector<8x128xf32> to vector<8x32xf32>
    %60 = vector.extract_strided_slice %57 {offsets = [0, 32], sizes = [8, 32], strides = [1, 1]} : vector<8x128xf32> to vector<8x32xf32>
    %61 = vector.extract_strided_slice %58 {offsets = [0, 64], sizes = [8, 32], strides = [1, 1]} : vector<8x128xf32> to vector<8x32xf32>
    %62 = vector.extract_strided_slice %57 {offsets = [0, 96], sizes = [8, 32], strides = [1, 1]} : vector<8x128xf32> to vector<8x32xf32>
    %63 = arith.mulf %60, %12 : vector<8x32xf32>
    %64 = arith.mulf %59, %61 : vector<8x32xf32>
    %65 = arith.addf %63, %64 : vector<8x32xf32>
    %66 = math.tanh %65 : vector<8x32xf32>
    %67 = arith.mulf %62, %66 : vector<8x32xf32>
    %68 = vector.extract_strided_slice %11 {offsets = [16, 0], sizes = [8, 128], strides = [1, 1]} : vector<64x128xf32> to vector<8x128xf32>
    %cst_21 = arith.constant dense<0.000000e+00> : vector<8x128xf32>
    %69 = tpu.matmul %48, %2, %cst_21 {dimension_numbers = #tpu.dot_dimension_numbers<[1], [0], [0], [1], [0, 0, 1, 1], [], []>} : vector<8x32xf32>, vector<32x128xf32>, vector<8x128xf32> -> vector<8x128xf32>
    %70 = arith.addf %68, %69 : vector<8x128xf32>
    %71 = arith.negf %70 : vector<8x128xf32>
    %72 = math.exp %71 : vector<8x128xf32>
    %cst_22 = arith.constant 1.000000e+00 : f32
    %73 = vector.broadcast %cst_22 : f32 to vector<8x128xf32>
    %74 = arith.addf %73, %72 : vector<8x128xf32>
    %75 = arith.divf %73, %74 : vector<8x128xf32>
    %76 = math.tanh %70 : vector<8x128xf32>
    %77 = vector.extract_strided_slice %75 {offsets = [0, 0], sizes = [8, 32], strides = [1, 1]} : vector<8x128xf32> to vector<8x32xf32>
    %78 = vector.extract_strided_slice %75 {offsets = [0, 32], sizes = [8, 32], strides = [1, 1]} : vector<8x128xf32> to vector<8x32xf32>
    %79 = vector.extract_strided_slice %76 {offsets = [0, 64], sizes = [8, 32], strides = [1, 1]} : vector<8x128xf32> to vector<8x32xf32>
    %80 = vector.extract_strided_slice %75 {offsets = [0, 96], sizes = [8, 32], strides = [1, 1]} : vector<8x128xf32> to vector<8x32xf32>
    %81 = arith.mulf %78, %46 : vector<8x32xf32>
    %82 = arith.mulf %77, %79 : vector<8x32xf32>
    %83 = arith.addf %81, %82 : vector<8x32xf32>
    %84 = math.tanh %83 : vector<8x32xf32>
    %85 = arith.mulf %80, %84 : vector<8x32xf32>
    %cst_23 = arith.constant dense<0.000000e+00> : vector<8x128xf32>
    %86 = tpu.matmul %48, %1, %cst_23 {dimension_numbers = #tpu.dot_dimension_numbers<[1], [0], [0], [1], [0, 0, 1, 1], [], []>} : vector<8x32xf32>, vector<32x128xf32>, vector<8x128xf32> -> vector<8x128xf32>
    %87 = arith.addf %86, %7 : vector<8x128xf32>
    %cst_24 = arith.constant dense<0.000000e+00> : vector<8x128xf32>
    %88 = tpu.matmul %67, %3, %cst_24 {dimension_numbers = #tpu.dot_dimension_numbers<[1], [0], [0], [1], [0, 0, 1, 1], [], []>} : vector<8x32xf32>, vector<32x128xf32>, vector<8x128xf32> -> vector<8x128xf32>
    %89 = arith.addf %87, %88 : vector<8x128xf32>
    %90 = arith.negf %89 : vector<8x128xf32>
    %91 = math.exp %90 : vector<8x128xf32>
    %cst_25 = arith.constant 1.000000e+00 : f32
    %92 = vector.broadcast %cst_25 : f32 to vector<8x128xf32>
    %93 = arith.addf %92, %91 : vector<8x128xf32>
    %94 = arith.divf %92, %93 : vector<8x128xf32>
    %95 = math.tanh %89 : vector<8x128xf32>
    %96 = vector.extract_strided_slice %94 {offsets = [0, 0], sizes = [8, 32], strides = [1, 1]} : vector<8x128xf32> to vector<8x32xf32>
    %97 = vector.extract_strided_slice %94 {offsets = [0, 32], sizes = [8, 32], strides = [1, 1]} : vector<8x128xf32> to vector<8x32xf32>
    %98 = vector.extract_strided_slice %95 {offsets = [0, 64], sizes = [8, 32], strides = [1, 1]} : vector<8x128xf32> to vector<8x32xf32>
    %99 = vector.extract_strided_slice %94 {offsets = [0, 96], sizes = [8, 32], strides = [1, 1]} : vector<8x128xf32> to vector<8x32xf32>
    %100 = arith.mulf %97, %65 : vector<8x32xf32>
    %101 = arith.mulf %96, %98 : vector<8x32xf32>
    %102 = arith.addf %100, %101 : vector<8x32xf32>
    %103 = math.tanh %102 : vector<8x32xf32>
    %104 = arith.mulf %99, %103 : vector<8x32xf32>
    %105 = vector.extract_strided_slice %11 {offsets = [24, 0], sizes = [8, 128], strides = [1, 1]} : vector<64x128xf32> to vector<8x128xf32>
    %cst_26 = arith.constant dense<0.000000e+00> : vector<8x128xf32>
    %106 = tpu.matmul %85, %2, %cst_26 {dimension_numbers = #tpu.dot_dimension_numbers<[1], [0], [0], [1], [0, 0, 1, 1], [], []>} : vector<8x32xf32>, vector<32x128xf32>, vector<8x128xf32> -> vector<8x128xf32>
    %107 = arith.addf %105, %106 : vector<8x128xf32>
    %108 = arith.negf %107 : vector<8x128xf32>
    %109 = math.exp %108 : vector<8x128xf32>
    %cst_27 = arith.constant 1.000000e+00 : f32
    %110 = vector.broadcast %cst_27 : f32 to vector<8x128xf32>
    %111 = arith.addf %110, %109 : vector<8x128xf32>
    %112 = arith.divf %110, %111 : vector<8x128xf32>
    %113 = math.tanh %107 : vector<8x128xf32>
    %114 = vector.extract_strided_slice %112 {offsets = [0, 0], sizes = [8, 32], strides = [1, 1]} : vector<8x128xf32> to vector<8x32xf32>
    %115 = vector.extract_strided_slice %112 {offsets = [0, 32], sizes = [8, 32], strides = [1, 1]} : vector<8x128xf32> to vector<8x32xf32>
    %116 = vector.extract_strided_slice %113 {offsets = [0, 64], sizes = [8, 32], strides = [1, 1]} : vector<8x128xf32> to vector<8x32xf32>
    %117 = vector.extract_strided_slice %112 {offsets = [0, 96], sizes = [8, 32], strides = [1, 1]} : vector<8x128xf32> to vector<8x32xf32>
    %118 = arith.mulf %115, %83 : vector<8x32xf32>
    %119 = arith.mulf %114, %116 : vector<8x32xf32>
    %120 = arith.addf %118, %119 : vector<8x32xf32>
    %121 = math.tanh %120 : vector<8x32xf32>
    %122 = arith.mulf %117, %121 : vector<8x32xf32>
    %cst_28 = arith.constant dense<0.000000e+00> : vector<8x128xf32>
    %123 = tpu.matmul %85, %1, %cst_28 {dimension_numbers = #tpu.dot_dimension_numbers<[1], [0], [0], [1], [0, 0, 1, 1], [], []>} : vector<8x32xf32>, vector<32x128xf32>, vector<8x128xf32> -> vector<8x128xf32>
    %124 = arith.addf %123, %7 : vector<8x128xf32>
    %cst_29 = arith.constant dense<0.000000e+00> : vector<8x128xf32>
    %125 = tpu.matmul %104, %3, %cst_29 {dimension_numbers = #tpu.dot_dimension_numbers<[1], [0], [0], [1], [0, 0, 1, 1], [], []>} : vector<8x32xf32>, vector<32x128xf32>, vector<8x128xf32> -> vector<8x128xf32>
    %126 = arith.addf %124, %125 : vector<8x128xf32>
    %127 = arith.negf %126 : vector<8x128xf32>
    %128 = math.exp %127 : vector<8x128xf32>
    %cst_30 = arith.constant 1.000000e+00 : f32
    %129 = vector.broadcast %cst_30 : f32 to vector<8x128xf32>
    %130 = arith.addf %129, %128 : vector<8x128xf32>
    %131 = arith.divf %129, %130 : vector<8x128xf32>
    %132 = math.tanh %126 : vector<8x128xf32>
    %133 = vector.extract_strided_slice %131 {offsets = [0, 0], sizes = [8, 32], strides = [1, 1]} : vector<8x128xf32> to vector<8x32xf32>
    %134 = vector.extract_strided_slice %131 {offsets = [0, 32], sizes = [8, 32], strides = [1, 1]} : vector<8x128xf32> to vector<8x32xf32>
    %135 = vector.extract_strided_slice %132 {offsets = [0, 64], sizes = [8, 32], strides = [1, 1]} : vector<8x128xf32> to vector<8x32xf32>
    %136 = vector.extract_strided_slice %131 {offsets = [0, 96], sizes = [8, 32], strides = [1, 1]} : vector<8x128xf32> to vector<8x32xf32>
    %137 = arith.mulf %134, %102 : vector<8x32xf32>
    %138 = arith.mulf %133, %135 : vector<8x32xf32>
    %139 = arith.addf %137, %138 : vector<8x32xf32>
    %140 = math.tanh %139 : vector<8x32xf32>
    %141 = arith.mulf %136, %140 : vector<8x32xf32>
    %142 = vector.extract_strided_slice %11 {offsets = [32, 0], sizes = [8, 128], strides = [1, 1]} : vector<64x128xf32> to vector<8x128xf32>
    %cst_31 = arith.constant dense<0.000000e+00> : vector<8x128xf32>
    %143 = tpu.matmul %122, %2, %cst_31 {dimension_numbers = #tpu.dot_dimension_numbers<[1], [0], [0], [1], [0, 0, 1, 1], [], []>} : vector<8x32xf32>, vector<32x128xf32>, vector<8x128xf32> -> vector<8x128xf32>
    %144 = arith.addf %142, %143 : vector<8x128xf32>
    %145 = arith.negf %144 : vector<8x128xf32>
    %146 = math.exp %145 : vector<8x128xf32>
    %cst_32 = arith.constant 1.000000e+00 : f32
    %147 = vector.broadcast %cst_32 : f32 to vector<8x128xf32>
    %148 = arith.addf %147, %146 : vector<8x128xf32>
    %149 = arith.divf %147, %148 : vector<8x128xf32>
    %150 = math.tanh %144 : vector<8x128xf32>
    %151 = vector.extract_strided_slice %149 {offsets = [0, 0], sizes = [8, 32], strides = [1, 1]} : vector<8x128xf32> to vector<8x32xf32>
    %152 = vector.extract_strided_slice %149 {offsets = [0, 32], sizes = [8, 32], strides = [1, 1]} : vector<8x128xf32> to vector<8x32xf32>
    %153 = vector.extract_strided_slice %150 {offsets = [0, 64], sizes = [8, 32], strides = [1, 1]} : vector<8x128xf32> to vector<8x32xf32>
    %154 = vector.extract_strided_slice %149 {offsets = [0, 96], sizes = [8, 32], strides = [1, 1]} : vector<8x128xf32> to vector<8x32xf32>
    %155 = arith.mulf %152, %120 : vector<8x32xf32>
    %156 = arith.mulf %151, %153 : vector<8x32xf32>
    %157 = arith.addf %155, %156 : vector<8x32xf32>
    %158 = math.tanh %157 : vector<8x32xf32>
    %159 = arith.mulf %154, %158 : vector<8x32xf32>
    %cst_33 = arith.constant dense<0.000000e+00> : vector<8x128xf32>
    %160 = tpu.matmul %122, %1, %cst_33 {dimension_numbers = #tpu.dot_dimension_numbers<[1], [0], [0], [1], [0, 0, 1, 1], [], []>} : vector<8x32xf32>, vector<32x128xf32>, vector<8x128xf32> -> vector<8x128xf32>
    %161 = arith.addf %160, %7 : vector<8x128xf32>
    %cst_34 = arith.constant dense<0.000000e+00> : vector<8x128xf32>
    %162 = tpu.matmul %141, %3, %cst_34 {dimension_numbers = #tpu.dot_dimension_numbers<[1], [0], [0], [1], [0, 0, 1, 1], [], []>} : vector<8x32xf32>, vector<32x128xf32>, vector<8x128xf32> -> vector<8x128xf32>
    %163 = arith.addf %161, %162 : vector<8x128xf32>
    %164 = arith.negf %163 : vector<8x128xf32>
    %165 = math.exp %164 : vector<8x128xf32>
    %cst_35 = arith.constant 1.000000e+00 : f32
    %166 = vector.broadcast %cst_35 : f32 to vector<8x128xf32>
    %167 = arith.addf %166, %165 : vector<8x128xf32>
    %168 = arith.divf %166, %167 : vector<8x128xf32>
    %169 = math.tanh %163 : vector<8x128xf32>
    %170 = vector.extract_strided_slice %168 {offsets = [0, 0], sizes = [8, 32], strides = [1, 1]} : vector<8x128xf32> to vector<8x32xf32>
    %171 = vector.extract_strided_slice %168 {offsets = [0, 32], sizes = [8, 32], strides = [1, 1]} : vector<8x128xf32> to vector<8x32xf32>
    %172 = vector.extract_strided_slice %169 {offsets = [0, 64], sizes = [8, 32], strides = [1, 1]} : vector<8x128xf32> to vector<8x32xf32>
    %173 = vector.extract_strided_slice %168 {offsets = [0, 96], sizes = [8, 32], strides = [1, 1]} : vector<8x128xf32> to vector<8x32xf32>
    %174 = arith.mulf %171, %139 : vector<8x32xf32>
    %175 = arith.mulf %170, %172 : vector<8x32xf32>
    %176 = arith.addf %174, %175 : vector<8x32xf32>
    %177 = math.tanh %176 : vector<8x32xf32>
    %178 = arith.mulf %173, %177 : vector<8x32xf32>
    %179 = vector.extract_strided_slice %11 {offsets = [40, 0], sizes = [8, 128], strides = [1, 1]} : vector<64x128xf32> to vector<8x128xf32>
    %cst_36 = arith.constant dense<0.000000e+00> : vector<8x128xf32>
    %180 = tpu.matmul %159, %2, %cst_36 {dimension_numbers = #tpu.dot_dimension_numbers<[1], [0], [0], [1], [0, 0, 1, 1], [], []>} : vector<8x32xf32>, vector<32x128xf32>, vector<8x128xf32> -> vector<8x128xf32>
    %181 = arith.addf %179, %180 : vector<8x128xf32>
    %182 = arith.negf %181 : vector<8x128xf32>
    %183 = math.exp %182 : vector<8x128xf32>
    %cst_37 = arith.constant 1.000000e+00 : f32
    %184 = vector.broadcast %cst_37 : f32 to vector<8x128xf32>
    %185 = arith.addf %184, %183 : vector<8x128xf32>
    %186 = arith.divf %184, %185 : vector<8x128xf32>
    %187 = math.tanh %181 : vector<8x128xf32>
    %188 = vector.extract_strided_slice %186 {offsets = [0, 0], sizes = [8, 32], strides = [1, 1]} : vector<8x128xf32> to vector<8x32xf32>
    %189 = vector.extract_strided_slice %186 {offsets = [0, 32], sizes = [8, 32], strides = [1, 1]} : vector<8x128xf32> to vector<8x32xf32>
    %190 = vector.extract_strided_slice %187 {offsets = [0, 64], sizes = [8, 32], strides = [1, 1]} : vector<8x128xf32> to vector<8x32xf32>
    %191 = vector.extract_strided_slice %186 {offsets = [0, 96], sizes = [8, 32], strides = [1, 1]} : vector<8x128xf32> to vector<8x32xf32>
    %192 = arith.mulf %189, %157 : vector<8x32xf32>
    %193 = arith.mulf %188, %190 : vector<8x32xf32>
    %194 = arith.addf %192, %193 : vector<8x32xf32>
    %195 = math.tanh %194 : vector<8x32xf32>
    %196 = arith.mulf %191, %195 : vector<8x32xf32>
    %cst_38 = arith.constant dense<0.000000e+00> : vector<8x128xf32>
    %197 = tpu.matmul %159, %1, %cst_38 {dimension_numbers = #tpu.dot_dimension_numbers<[1], [0], [0], [1], [0, 0, 1, 1], [], []>} : vector<8x32xf32>, vector<32x128xf32>, vector<8x128xf32> -> vector<8x128xf32>
    %198 = arith.addf %197, %7 : vector<8x128xf32>
    %cst_39 = arith.constant dense<0.000000e+00> : vector<8x128xf32>
    %199 = tpu.matmul %178, %3, %cst_39 {dimension_numbers = #tpu.dot_dimension_numbers<[1], [0], [0], [1], [0, 0, 1, 1], [], []>} : vector<8x32xf32>, vector<32x128xf32>, vector<8x128xf32> -> vector<8x128xf32>
    %200 = arith.addf %198, %199 : vector<8x128xf32>
    %201 = arith.negf %200 : vector<8x128xf32>
    %202 = math.exp %201 : vector<8x128xf32>
    %cst_40 = arith.constant 1.000000e+00 : f32
    %203 = vector.broadcast %cst_40 : f32 to vector<8x128xf32>
    %204 = arith.addf %203, %202 : vector<8x128xf32>
    %205 = arith.divf %203, %204 : vector<8x128xf32>
    %206 = math.tanh %200 : vector<8x128xf32>
    %207 = vector.extract_strided_slice %205 {offsets = [0, 0], sizes = [8, 32], strides = [1, 1]} : vector<8x128xf32> to vector<8x32xf32>
    %208 = vector.extract_strided_slice %205 {offsets = [0, 32], sizes = [8, 32], strides = [1, 1]} : vector<8x128xf32> to vector<8x32xf32>
    %209 = vector.extract_strided_slice %206 {offsets = [0, 64], sizes = [8, 32], strides = [1, 1]} : vector<8x128xf32> to vector<8x32xf32>
    %210 = vector.extract_strided_slice %205 {offsets = [0, 96], sizes = [8, 32], strides = [1, 1]} : vector<8x128xf32> to vector<8x32xf32>
    %211 = arith.mulf %208, %176 : vector<8x32xf32>
    %212 = arith.mulf %207, %209 : vector<8x32xf32>
    %213 = arith.addf %211, %212 : vector<8x32xf32>
    %214 = math.tanh %213 : vector<8x32xf32>
    %215 = arith.mulf %210, %214 : vector<8x32xf32>
    %216 = vector.extract_strided_slice %11 {offsets = [48, 0], sizes = [8, 128], strides = [1, 1]} : vector<64x128xf32> to vector<8x128xf32>
    %cst_41 = arith.constant dense<0.000000e+00> : vector<8x128xf32>
    %217 = tpu.matmul %196, %2, %cst_41 {dimension_numbers = #tpu.dot_dimension_numbers<[1], [0], [0], [1], [0, 0, 1, 1], [], []>} : vector<8x32xf32>, vector<32x128xf32>, vector<8x128xf32> -> vector<8x128xf32>
    %218 = arith.addf %216, %217 : vector<8x128xf32>
    %219 = arith.negf %218 : vector<8x128xf32>
    %220 = math.exp %219 : vector<8x128xf32>
    %cst_42 = arith.constant 1.000000e+00 : f32
    %221 = vector.broadcast %cst_42 : f32 to vector<8x128xf32>
    %222 = arith.addf %221, %220 : vector<8x128xf32>
    %223 = arith.divf %221, %222 : vector<8x128xf32>
    %224 = math.tanh %218 : vector<8x128xf32>
    %225 = vector.extract_strided_slice %223 {offsets = [0, 0], sizes = [8, 32], strides = [1, 1]} : vector<8x128xf32> to vector<8x32xf32>
    %226 = vector.extract_strided_slice %223 {offsets = [0, 32], sizes = [8, 32], strides = [1, 1]} : vector<8x128xf32> to vector<8x32xf32>
    %227 = vector.extract_strided_slice %224 {offsets = [0, 64], sizes = [8, 32], strides = [1, 1]} : vector<8x128xf32> to vector<8x32xf32>
    %228 = vector.extract_strided_slice %223 {offsets = [0, 96], sizes = [8, 32], strides = [1, 1]} : vector<8x128xf32> to vector<8x32xf32>
    %229 = arith.mulf %226, %194 : vector<8x32xf32>
    %230 = arith.mulf %225, %227 : vector<8x32xf32>
    %231 = arith.addf %229, %230 : vector<8x32xf32>
    %232 = math.tanh %231 : vector<8x32xf32>
    %233 = arith.mulf %228, %232 : vector<8x32xf32>
    %cst_43 = arith.constant dense<0.000000e+00> : vector<8x128xf32>
    %234 = tpu.matmul %196, %1, %cst_43 {dimension_numbers = #tpu.dot_dimension_numbers<[1], [0], [0], [1], [0, 0, 1, 1], [], []>} : vector<8x32xf32>, vector<32x128xf32>, vector<8x128xf32> -> vector<8x128xf32>
    %235 = arith.addf %234, %7 : vector<8x128xf32>
    %cst_44 = arith.constant dense<0.000000e+00> : vector<8x128xf32>
    %236 = tpu.matmul %215, %3, %cst_44 {dimension_numbers = #tpu.dot_dimension_numbers<[1], [0], [0], [1], [0, 0, 1, 1], [], []>} : vector<8x32xf32>, vector<32x128xf32>, vector<8x128xf32> -> vector<8x128xf32>
    %237 = arith.addf %235, %236 : vector<8x128xf32>
    %238 = arith.negf %237 : vector<8x128xf32>
    %239 = math.exp %238 : vector<8x128xf32>
    %cst_45 = arith.constant 1.000000e+00 : f32
    %240 = vector.broadcast %cst_45 : f32 to vector<8x128xf32>
    %241 = arith.addf %240, %239 : vector<8x128xf32>
    %242 = arith.divf %240, %241 : vector<8x128xf32>
    %243 = math.tanh %237 : vector<8x128xf32>
    %244 = vector.extract_strided_slice %242 {offsets = [0, 0], sizes = [8, 32], strides = [1, 1]} : vector<8x128xf32> to vector<8x32xf32>
    %245 = vector.extract_strided_slice %242 {offsets = [0, 32], sizes = [8, 32], strides = [1, 1]} : vector<8x128xf32> to vector<8x32xf32>
    %246 = vector.extract_strided_slice %243 {offsets = [0, 64], sizes = [8, 32], strides = [1, 1]} : vector<8x128xf32> to vector<8x32xf32>
    %247 = vector.extract_strided_slice %242 {offsets = [0, 96], sizes = [8, 32], strides = [1, 1]} : vector<8x128xf32> to vector<8x32xf32>
    %248 = arith.mulf %245, %213 : vector<8x32xf32>
    %249 = arith.mulf %244, %246 : vector<8x32xf32>
    %250 = arith.addf %248, %249 : vector<8x32xf32>
    %251 = math.tanh %250 : vector<8x32xf32>
    %252 = arith.mulf %247, %251 : vector<8x32xf32>
    %253 = vector.extract_strided_slice %11 {offsets = [56, 0], sizes = [8, 128], strides = [1, 1]} : vector<64x128xf32> to vector<8x128xf32>
    %cst_46 = arith.constant dense<0.000000e+00> : vector<8x128xf32>
    %254 = tpu.matmul %233, %2, %cst_46 {dimension_numbers = #tpu.dot_dimension_numbers<[1], [0], [0], [1], [0, 0, 1, 1], [], []>} : vector<8x32xf32>, vector<32x128xf32>, vector<8x128xf32> -> vector<8x128xf32>
    %255 = arith.addf %253, %254 : vector<8x128xf32>
    %256 = arith.negf %255 : vector<8x128xf32>
    %257 = math.exp %256 : vector<8x128xf32>
    %cst_47 = arith.constant 1.000000e+00 : f32
    %258 = vector.broadcast %cst_47 : f32 to vector<8x128xf32>
    %259 = arith.addf %258, %257 : vector<8x128xf32>
    %260 = arith.divf %258, %259 : vector<8x128xf32>
    %261 = math.tanh %255 : vector<8x128xf32>
    %262 = vector.extract_strided_slice %260 {offsets = [0, 0], sizes = [8, 32], strides = [1, 1]} : vector<8x128xf32> to vector<8x32xf32>
    %263 = vector.extract_strided_slice %260 {offsets = [0, 32], sizes = [8, 32], strides = [1, 1]} : vector<8x128xf32> to vector<8x32xf32>
    %264 = vector.extract_strided_slice %261 {offsets = [0, 64], sizes = [8, 32], strides = [1, 1]} : vector<8x128xf32> to vector<8x32xf32>
    %265 = vector.extract_strided_slice %260 {offsets = [0, 96], sizes = [8, 32], strides = [1, 1]} : vector<8x128xf32> to vector<8x32xf32>
    %266 = arith.mulf %263, %231 : vector<8x32xf32>
    %267 = arith.mulf %262, %264 : vector<8x32xf32>
    %268 = arith.addf %266, %267 : vector<8x32xf32>
    %269 = math.tanh %268 : vector<8x32xf32>
    %270 = arith.mulf %265, %269 : vector<8x32xf32>
    %cst_48 = arith.constant dense<0.000000e+00> : vector<8x128xf32>
    %271 = tpu.matmul %233, %1, %cst_48 {dimension_numbers = #tpu.dot_dimension_numbers<[1], [0], [0], [1], [0, 0, 1, 1], [], []>} : vector<8x32xf32>, vector<32x128xf32>, vector<8x128xf32> -> vector<8x128xf32>
    %272 = arith.addf %271, %7 : vector<8x128xf32>
    %cst_49 = arith.constant dense<0.000000e+00> : vector<8x128xf32>
    %273 = tpu.matmul %252, %3, %cst_49 {dimension_numbers = #tpu.dot_dimension_numbers<[1], [0], [0], [1], [0, 0, 1, 1], [], []>} : vector<8x32xf32>, vector<32x128xf32>, vector<8x128xf32> -> vector<8x128xf32>
    %274 = arith.addf %272, %273 : vector<8x128xf32>
    %275 = arith.negf %274 : vector<8x128xf32>
    %276 = math.exp %275 : vector<8x128xf32>
    %cst_50 = arith.constant 1.000000e+00 : f32
    %277 = vector.broadcast %cst_50 : f32 to vector<8x128xf32>
    %278 = arith.addf %277, %276 : vector<8x128xf32>
    %279 = arith.divf %277, %278 : vector<8x128xf32>
    %280 = math.tanh %274 : vector<8x128xf32>
    %281 = vector.extract_strided_slice %279 {offsets = [0, 0], sizes = [8, 32], strides = [1, 1]} : vector<8x128xf32> to vector<8x32xf32>
    %282 = vector.extract_strided_slice %279 {offsets = [0, 32], sizes = [8, 32], strides = [1, 1]} : vector<8x128xf32> to vector<8x32xf32>
    %283 = vector.extract_strided_slice %280 {offsets = [0, 64], sizes = [8, 32], strides = [1, 1]} : vector<8x128xf32> to vector<8x32xf32>
    %284 = vector.extract_strided_slice %279 {offsets = [0, 96], sizes = [8, 32], strides = [1, 1]} : vector<8x128xf32> to vector<8x32xf32>
    %285 = arith.mulf %282, %250 : vector<8x32xf32>
    %286 = arith.mulf %281, %283 : vector<8x32xf32>
    %287 = arith.addf %285, %286 : vector<8x32xf32>
    %288 = math.tanh %287 : vector<8x32xf32>
    %289 = arith.mulf %284, %288 : vector<8x32xf32>
    %cst_51 = arith.constant dense<0.000000e+00> : vector<8x128xf32>
    %290 = tpu.matmul %270, %1, %cst_51 {dimension_numbers = #tpu.dot_dimension_numbers<[1], [0], [0], [1], [0, 0, 1, 1], [], []>} : vector<8x32xf32>, vector<32x128xf32>, vector<8x128xf32> -> vector<8x128xf32>
    %291 = arith.addf %290, %7 : vector<8x128xf32>
    %cst_52 = arith.constant dense<0.000000e+00> : vector<8x128xf32>
    %292 = tpu.matmul %289, %3, %cst_52 {dimension_numbers = #tpu.dot_dimension_numbers<[1], [0], [0], [1], [0, 0, 1, 1], [], []>} : vector<8x32xf32>, vector<32x128xf32>, vector<8x128xf32> -> vector<8x128xf32>
    %293 = arith.addf %291, %292 : vector<8x128xf32>
    %294 = arith.negf %293 : vector<8x128xf32>
    %295 = math.exp %294 : vector<8x128xf32>
    %cst_53 = arith.constant 1.000000e+00 : f32
    %296 = vector.broadcast %cst_53 : f32 to vector<8x128xf32>
    %297 = arith.addf %296, %295 : vector<8x128xf32>
    %298 = arith.divf %296, %297 : vector<8x128xf32>
    %299 = math.tanh %293 : vector<8x128xf32>
    %300 = vector.extract_strided_slice %298 {offsets = [0, 0], sizes = [8, 32], strides = [1, 1]} : vector<8x128xf32> to vector<8x32xf32>
    %301 = vector.extract_strided_slice %298 {offsets = [0, 32], sizes = [8, 32], strides = [1, 1]} : vector<8x128xf32> to vector<8x32xf32>
    %302 = vector.extract_strided_slice %299 {offsets = [0, 64], sizes = [8, 32], strides = [1, 1]} : vector<8x128xf32> to vector<8x32xf32>
    %303 = vector.extract_strided_slice %298 {offsets = [0, 96], sizes = [8, 32], strides = [1, 1]} : vector<8x128xf32> to vector<8x32xf32>
    %304 = arith.mulf %301, %287 : vector<8x32xf32>
    %305 = arith.mulf %300, %302 : vector<8x32xf32>
    %306 = arith.addf %304, %305 : vector<8x32xf32>
    %307 = math.tanh %306 : vector<8x32xf32>
    %308 = arith.mulf %303, %307 : vector<8x32xf32>
    %c0_54 = arith.constant 0 : index
    %c0_55 = arith.constant 0 : index
    %309 = vector.load %arg7[%c0_54, %c0_55] : memref<32x8xf32, #tpu.memory_space<vmem>>, vector<32x8xf32>
    %cst_56 = arith.constant dense<0.000000e+00> : vector<8x8xf32>
    %310 = tpu.matmul %308, %309, %cst_56 {dimension_numbers = #tpu.dot_dimension_numbers<[1], [0], [0], [1], [0, 0, 1, 1], [], []>} : vector<8x32xf32>, vector<32x8xf32>, vector<8x8xf32> -> vector<8x8xf32>
    %c0_57 = arith.constant 0 : index
    %c0_58 = arith.constant 0 : index
    %311 = vector.load %arg8[%c0_57, %c0_58] : memref<1x8xf32, #tpu.memory_space<vmem>>, vector<1x8xf32>
    %312 = vector.broadcast %311 : vector<1x8xf32> to vector<8x8xf32>
    %313 = arith.addf %310, %312 : vector<8x8xf32>
    %c0_59 = arith.constant 0 : index
    %c0_60 = arith.constant 0 : index
    %314 = vector.load %arg9[%c0_59, %c0_60] : memref<8x8xf32, #tpu.memory_space<vmem>>, vector<8x8xf32>
    tpu.vector_store %arg9[%c0_59, %c0_60], %313 {strides = array<i32>} : memref<8x8xf32, #tpu.memory_space<vmem>>, vector<8x8xf32>,
    return
  }
}

</mosaic_0001>

<llo_original>
// kernel: rnn_forward.1
$region0: #{rnn_forward.1}
  #allocation0 [shape = 'u32[]', space=smem, size = 0x4, offset = 0x4, fixed_abs, tag = 'smem constant byte address 0x4 - core index']
  #allocation1 [shape = 'u32[144,128]{1,0:T(1,128)}', space=vmem, size = 0x12000, scoped, tag = 'internal scratch']
  %s0 = inlined_call_operand.vmem [shape: f32[64,16], index: 0, kind: input, shape index: {}]
  %s1 = inlined_call_operand.vmem [shape: f32[16,128], index: 1, kind: input, shape index: {}]
  %s2 = inlined_call_operand.vmem [shape: f32[32,128], index: 2, kind: input, shape index: {}]
  %s3 = inlined_call_operand.vmem [shape: f32[1,128], index: 3, kind: input, shape index: {}]
  %s4 = inlined_call_operand.vmem [shape: f32[32,128], index: 4, kind: input, shape index: {}]
  %s5 = inlined_call_operand.vmem [shape: f32[32,128], index: 5, kind: input, shape index: {}]
  %s6 = inlined_call_operand.vmem [shape: f32[1,128], index: 6, kind: input, shape index: {}]
  %s7 = inlined_call_operand.vmem [shape: f32[32,8], index: 7, kind: input, shape index: {}]
  %s8 = inlined_call_operand.vmem [shape: f32[1,8], index: 8, kind: input, shape index: {}]
  %s9 = inlined_call_operand.hbm [shape: f32[8,8], index: 9, kind: output, shape index: {}]
  %s10 = sld [smem:[#allocation0]]
  $region46: #{rnn_forward.1} parent=0
    _
  %s12 = ssub.s32 1, %s10
  %s13 = scalar_select 0, %s12, %s10
  $region1: #{rnn_forward.1} parent=0
    #allocation2 [shape = 'u8[4096]{0}', space=vmem, size = 0x1000, scoped, tag = 'output window, operand 0, single buffered']
    #allocation3 [shape = 's32[1]{0}', space=sflag, size = 0x4, scoped, tag = 'scoped memory for rnn_forward.1']
    %14 = vsyncpa [#allocation3], 0
    // Predicated region
    $region2: #{rnn_forward.1} parent=1 // pred_check
      _
    $region3: #{rnn_forward.1} parent=1 // pred_check_branch
      %16 = sbr.rel (0) target = $region5
    $region4: #{rnn_forward.1} parent=1 // pred_region
      _
    $region5: #{rnn_forward.1} parent=1 // pred_fallthru
      _
    // Predicated region
    $region6: #{rnn_forward.1} parent=1 // pred_check
      _
    $region7: #{rnn_forward.1} parent=1 // pred_check_branch
      %18 = sbr.rel (0) target = $region9
    $region8: #{rnn_forward.1} parent=1 // pred_region
      _
    $region9: #{rnn_forward.1} parent=1 // pred_fallthru
      _
    // Predicated region
    $region10: #{rnn_forward.1} parent=1 // pred_check
      _
    $region11: #{rnn_forward.1} parent=1 // pred_check_branch
      %20 = sbr.rel (0) target = $region13
    $region12: #{rnn_forward.1} parent=1 // pred_region
      _
    $region13: #{rnn_forward.1} parent=1 // pred_fallthru
      _
    // Predicated region
    $region14: #{rnn_forward.1} parent=1 // pred_check
      _
    $region15: #{rnn_forward.1} parent=1 // pred_check_branch
      %22 = sbr.rel (0) target = $region17
    $region16: #{rnn_forward.1} parent=1 // pred_region
      _
    $region17: #{rnn_forward.1} parent=1 // pred_fallthru
      _
    // Predicated region
    $region18: #{rnn_forward.1} parent=1 // pred_check
      _
    $region19: #{rnn_forward.1} parent=1 // pred_check_branch
      %24 = sbr.rel (0) target = $region21
    $region20: #{rnn_forward.1} parent=1 // pred_region
      _
    $region21: #{rnn_forward.1} parent=1 // pred_fallthru
      _
    // Predicated region
    $region22: #{rnn_forward.1} parent=1 // pred_check
      _
    $region23: #{rnn_forward.1} parent=1 // pred_check_branch
      %26 = sbr.rel (0) target = $region25
    $region24: #{rnn_forward.1} parent=1 // pred_region
      _
    $region25: #{rnn_forward.1} parent=1 // pred_fallthru
      _
    // Predicated region
    $region26: #{rnn_forward.1} parent=1 // pred_check
      _
    $region27: #{rnn_forward.1} parent=1 // pred_check_branch
      %28 = sbr.rel (0) target = $region29
    $region28: #{rnn_forward.1} parent=1 // pred_region
      _
    $region29: #{rnn_forward.1} parent=1 // pred_fallthru
      _
    // Predicated region
    $region30: #{rnn_forward.1} parent=1 // pred_check
      _
    $region31: #{rnn_forward.1} parent=1 // pred_check_branch
      %30 = sbr.rel (0) target = $region33
    $region32: #{rnn_forward.1} parent=1 // pred_region
      _
    $region33: #{rnn_forward.1} parent=1 // pred_fallthru
      _
    // Predicated region
    $region34: #{rnn_forward.1} parent=1 // pred_check
      _
    $region35: #{rnn_forward.1} parent=1 // pred_check_branch
      %32 = sbr.rel (0) target = $region37
    $region36: #{rnn_forward.1} parent=1 // pred_region
      _
    $region37: #{rnn_forward.1} parent=1 // pred_fallthru
      _
    %v33 = vld [vmem:[%s1] sm:$0xff]
    %v34 = vld [vmem:[%s1 + $0x8] sm:$0xff]
    %v35 = vld [vmem:[%s4] sm:$0xff]
    %v36 = vld [vmem:[%s4 + $0x8] sm:$0xff]
    %v37 = vld [vmem:[%s4 + $0x10] sm:$0xff]
    %v38 = vld [vmem:[%s4 + $0x18] sm:$0xff]
    %v39 = vld [vmem:[%s2] sm:$0xff]
    %v40 = vld [vmem:[%s2 + $0x8] sm:$0xff]
    %v41 = vld [vmem:[%s2 + $0x10] sm:$0xff]
    %v42 = vld [vmem:[%s2 + $0x18] sm:$0xff]
    %v43 = vld [vmem:[%s5] sm:$0xff]
    %v44 = vld [vmem:[%s5 + $0x8] sm:$0xff]
    %v45 = vld [vmem:[%s5 + $0x10] sm:$0xff]
    %v46 = vld [vmem:[%s5 + $0x18] sm:$0xff]
    %v47 = vld [vmem:[%s3] sm:$0x1]
    %v48 = vld [vmem:[%s6] sm:$0x1]
    %v50 = vlaneseq
    %v51 = vshrl.u32 %v50, 7
    %v52 = vsub.s32 0, %v51
    %v53 = vrot.slane %v48, %v52
    %v55 = vld [vmem:[%s0] sm:$0xff]
    %v56 = vld [vmem:[%s0 + $0x8] sm:$0xff]
    %v57 = vld [vmem:[%s0 + $0x10] sm:$0xff]
    %v58 = vld [vmem:[%s0 + $0x18] sm:$0xff]
    %v59 = vld [vmem:[%s0 + $0x20] sm:$0xff]
    %v60 = vld [vmem:[%s0 + $0x28] sm:$0xff]
    %v61 = vld [vmem:[%s0 + $0x30] sm:$0xff]
    %v62 = vld [vmem:[%s0 + $0x38] sm:$0xff]
    %v64 = vlaneseq
    %v65 = vshrl.u32 %v64, 7
    %v66 = vsub.s32 0, %v65
    %v67 = vrot.slane %v47, %v66
    %vm69 = vcmask 130048
    %v71 = vsel %vm69, %v55, 0
    %v74 = vsel %vm69, %v56, 0
    %v77 = vsel %vm69, %v57, 0
    %v80 = vsel %vm69, %v58, 0
    %v83 = vsel %vm69, %v59, 0
    %v86 = vsel %vm69, %v60, 0
    %v89 = vsel %vm69, %v61, 0
    %v92 = vsel %vm69, %v62, 0
    %94 = vmatprep.subr.mxu0 0.0
    %95 = vmatpush1.msra.mxu0 %v33
    %96 = vmatprep.subr.mxu0 0.0
    %97 = vmatpush1.msra.mxu0 %v34
    %98 = vmatprep.subr.mxu0 0.0
    %99 = vmatpush1.msra.mxu0 0.0
    %100 = vmatprep.subr.mxu0 0.0
    %101 = vmatpush1.msra.mxu0 0.0
    %102 = vmatprep.subr.mxu0 0.0
    %103 = vmatpush1.msra.mxu0 0.0
    %104 = vmatprep.subr.mxu0 0.0
    %105 = vmatpush1.msra.mxu0 0.0
    %106 = vmatprep.subr.mxu0 0.0
    %107 = vmatpush1.msra.mxu0 0.0
    %108 = vmatprep.subr.mxu0 0.0
    %109 = vmatpush1.msra.mxu0 0.0
    %110 = vmatprep.subr.mxu0 0.0
    %111 = vmatpush1.msra.mxu0 0.0
    %112 = vmatprep.subr.mxu0 0.0
    %113 = vmatpush1.msra.mxu0 0.0
    %114 = vmatprep.subr.mxu0 0.0
    %115 = vmatpush1.msra.mxu0 0.0
    %116 = vmatprep.subr.mxu0 0.0
    %117 = vmatpush1.msra.mxu0 0.0
    %118 = vmatprep.subr.mxu0 0.0
    %119 = vmatpush1.msra.mxu0 0.0
    %120 = vmatprep.subr.mxu0 0.0
    %121 = vmatpush1.msra.mxu0 0.0
    %122 = vmatprep.subr.mxu0 0.0
    %123 = vmatpush1.msra.mxu0 0.0
    %124 = vmatprep.subr.mxu0 0.0
    %125 = vmatpush1.msra.mxu0 0.0
    %126 = vmatprep.subr.mxu0 0.0
    %127 = vmatpush1.msra.mxu0 0.0
    %128 = vmatprep.subr.mxu0 0.0
    %129 = vmatpush1.msra.mxu0 0.0
    %130 = vmatprep.subr.mxu0 0.0
    %131 = vmatpush1.msra.mxu0 0.0
    %132 = vmatprep.subr.mxu0 0.0
    %133 = vmatpush1.msra.mxu0 0.0
    %134 = vmatprep.subr.mxu0 0.0
    %135 = vmatpush1.msra.mxu0 0.0
    %136 = vmatprep.subr.mxu0 0.0
    %137 = vmatpush1.msra.mxu0 0.0
    %138 = vmatprep.subr.mxu0 0.0
    %139 = vmatpush1.msra.mxu0 0.0
    %140 = vmatprep.subr.mxu0 0.0
    %141 = vmatpush1.msra.mxu0 0.0
    %142 = vmatprep.subr.mxu0 0.0
    %143 = vmatpush1.msra.mxu0 0.0
    %144 = vmatprep.subr.mxu0 0.0
    %145 = vmatpush1.msra.mxu0 0.0
    %146 = vmatprep.subr.mxu0 0.0
    %147 = vmatpush1.msra.mxu0 0.0
    %148 = vmatprep.subr.mxu0 0.0
    %149 = vmatpush1.msra.mxu0 0.0
    %150 = vmatprep.subr.mxu0 0.0
    %151 = vmatpush1.msra.mxu0 0.0
    %152 = vmatprep.subr.mxu0 0.0
    %153 = vmatpush1.msra.mxu0 0.0
    %154 = vmatprep.subr.mxu0 0.0
    %155 = vmatpush1.msra.mxu0 0.0
    %156 = vmatprep.subr.mxu0 0.0
    %157 = vmatpush1.msra.mxu0 0.0
    %158 = vmatprep.mubr.f32.mxu0 0.0
    %159 = vmatmul.mubr.f32.gmra.mrb[0].mxu0 %v71
    %v160 = vpop.f32.mrb[0].mxu0
    %v161 = vadd.f32 %v67, %v160
    %v162 = vpop.f32.mrb[0].mxu0
    %163 = vmatprep.mubr.f32.mxu0 0.0
    %164 = vmatmul.mubr.f32.gmra.mrb[0].mxu0 %v74
    %v165 = vpop.f32.mrb[0].mxu0
    %v166 = vadd.f32 %v67, %v165
    %v167 = vpop.f32.mrb[0].mxu0
    %168 = vmatprep.mubr.f32.mxu0 0.0
    %169 = vmatmul.mubr.f32.gmra.mrb[0].mxu0 %v77
    %v170 = vpop.f32.mrb[0].mxu0
    %v171 = vadd.f32 %v67, %v170
    %v172 = vpop.f32.mrb[0].mxu0
    %173 = vmatprep.mubr.f32.mxu0 0.0
    %174 = vmatmul.mubr.f32.gmra.mrb[0].mxu0 %v80
    %v175 = vpop.f32.mrb[0].mxu0
    %v176 = vadd.f32 %v67, %v175
    %v177 = vpop.f32.mrb[0].mxu0
    %178 = vmatprep.mubr.f32.mxu0 0.0
    %179 = vmatmul.mubr.f32.gmra.mrb[0].mxu0 %v83
    %v180 = vpop.f32.mrb[0].mxu0
    %v181 = vadd.f32 %v67, %v180
    %v182 = vpop.f32.mrb[0].mxu0
    %183 = vmatprep.mubr.f32.mxu0 0.0
    %184 = vmatmul.mubr.f32.gmra.mrb[0].mxu0 %v86
    %v185 = vpop.f32.mrb[0].mxu0
    %v186 = vadd.f32 %v67, %v185
    %v187 = vpop.f32.mrb[0].mxu0
    %188 = vmatprep.mubr.f32.mxu0 0.0
    %189 = vmatmul.mubr.f32.gmra.mrb[0].mxu0 %v89
    %v190 = vpop.f32.mrb[0].mxu0
    %v191 = vadd.f32 %v67, %v190
    %v192 = vpop.f32.mrb[0].mxu0
    %193 = vmatprep.mubr.f32.mxu0 0.0
    %194 = vmatmul.mubr.f32.gmra.mrb[0].mxu0 %v92
    %v195 = vpop.f32.mrb[0].mxu0
    %v196 = vadd.f32 %v67, %v195
    %v197 = vpop.f32.mrb[0].mxu0
    %198 = vdwg.mxu0
    %vm199 = vcmask 261120
    %v201 = vsel %vm199, 0.0, 0
    %203 = vmatprep.subr.mxu0 0.0
    %204 = vmatpush1.msra.mxu0 %v39
    %205 = vmatprep.subr.mxu0 0.0
    %206 = vmatpush1.msra.mxu0 %v40
    %207 = vmatprep.subr.mxu0 0.0
    %208 = vmatpush1.msra.mxu0 %v41
    %209 = vmatprep.subr.mxu0 0.0
    %210 = vmatpush1.msra.mxu0 %v42
    %211 = vmatprep.subr.mxu0 0.0
    %212 = vmatpush1.msra.mxu0 0.0
    %213 = vmatprep.subr.mxu0 0.0
    %214 = vmatpush1.msra.mxu0 0.0
    %215 = vmatprep.subr.mxu0 0.0
    %216 = vmatpush1.msra.mxu0 0.0
    %217 = vmatprep.subr.mxu0 0.0
    %218 = vmatpush1.msra.mxu0 0.0
    %219 = vmatprep.subr.mxu0 0.0
    %220 = vmatpush1.msra.mxu0 0.0
    %221 = vmatprep.subr.mxu0 0.0
    %222 = vmatpush1.msra.mxu0 0.0
    %223 = vmatprep.subr.mxu0 0.0
    %224 = vmatpush1.msra.mxu0 0.0
    %225 = vmatprep.subr.mxu0 0.0
    %226 = vmatpush1.msra.mxu0 0.0
    %227 = vmatprep.subr.mxu0 0.0
    %228 = vmatpush1.msra.mxu0 0.0
    %229 = vmatprep.subr.mxu0 0.0
    %230 = vmatpush1.msra.mxu0 0.0
    %231 = vmatprep.subr.mxu0 0.0
    %232 = vmatpush1.msra.mxu0 0.0
    %233 = vmatprep.subr.mxu0 0.0
    %234 = vmatpush1.msra.mxu0 0.0
    %235 = vmatprep.subr.mxu0 0.0
    %236 = vmatpush1.msra.mxu0 0.0
    %237 = vmatprep.subr.mxu0 0.0
    %238 = vmatpush1.msra.mxu0 0.0
    %239 = vmatprep.subr.mxu0 0.0
    %240 = vmatpush1.msra.mxu0 0.0
    %241 = vmatprep.subr.mxu0 0.0
    %242 = vmatpush1.msra.mxu0 0.0
    %243 = vmatprep.subr.mxu0 0.0
    %244 = vmatpush1.msra.mxu0 0.0
    %245 = vmatprep.subr.mxu0 0.0
    %246 = vmatpush1.msra.mxu0 0.0
    %247 = vmatprep.subr.mxu0 0.0
    %248 = vmatpush1.msra.mxu0 0.0
    %249 = vmatprep.subr.mxu0 0.0
    %250 = vmatpush1.msra.mxu0 0.0
    %251 = vmatprep.subr.mxu0 0.0
    %252 = vmatpush1.msra.mxu0 0.0
    %253 = vmatprep.subr.mxu0 0.0
    %254 = vmatpush1.msra.mxu0 0.0
    %255 = vmatprep.subr.mxu0 0.0
    %256 = vmatpush1.msra.mxu0 0.0
    %257 = vmatprep.subr.mxu0 0.0
    %258 = vmatpush1.msra.mxu0 0.0
    %259 = vmatprep.subr.mxu0 0.0
    %260 = vmatpush1.msra.mxu0 0.0
    %261 = vmatprep.subr.mxu0 0.0
    %262 = vmatpush1.msra.mxu0 0.0
    %263 = vmatprep.subr.mxu0 0.0
    %264 = vmatpush1.msra.mxu0 0.0
    %265 = vmatprep.subr.mxu0 0.0
    %266 = vmatpush1.msra.mxu0 0.0
    %267 = vmatprep.mubr.f32.mxu0 0.0
    %268 = vmatmul.mubr.f32.gmra.mrb[0].mxu0 %v201
    %v269 = vpop.f32.mrb[0].mxu0
    %v270 = vadd.f32 0.0, %v269
    %v271 = vpop.f32.mrb[0].mxu0
    %272 = vdwg.mxu0
    %v273 = vadd.f32 %v161, %v270
    %v274 = vxor.u32 %v273, 2147483648
    %v275 = vmul.f32 %v274, 1.442695
    %v276 = vpow.pop %v275
    %v277 = vadd.f32 %v276, 1.0
    %v278 = vrcp.pop %v277
    %v279 = vmul.f32 1.0, %v278
    %v280 = vtanh.pop %v273
    %v281 = vmul.f32 %v279, 0.0
    %283 = vrot.lane.b32.xlu0 %v280, 64
    %v284 = vpop.permute.xlu0 %283
    %v286 = vmul.f32 %v279, %v284
    %288 = vrot.lane.b32.xlu0 %v286, 32
    %v289 = vpop.permute.xlu0 %288
    %v291 = vadd.f32 %v281, %v289
    %v292 = vtanh.pop %v291
    %294 = vrot.lane.b32.xlu0 %v292, 64
    %v295 = vpop.permute.xlu0 %294
    %v297 = vmul.f32 %v279, %v295
    %299 = vrot.lane.b32.xlu0 %v297, 32
    %v300 = vpop.permute.xlu0 %299
    %v301 = vsel %vm199, %v300, 0
    %303 = vmatprep.subr.mxu0 0.0
    %304 = vmatpush1.msra.mxu0 %v39
    %305 = vmatprep.subr.mxu0 0.0
    %306 = vmatpush1.msra.mxu0 %v40
    %307 = vmatprep.subr.mxu0 0.0
    %308 = vmatpush1.msra.mxu0 %v41
    %309 = vmatprep.subr.mxu0 0.0
    %310 = vmatpush1.msra.mxu0 %v42
    %311 = vmatprep.subr.mxu0 0.0
    %312 = vmatpush1.msra.mxu0 0.0
    %313 = vmatprep.subr.mxu0 0.0
    %314 = vmatpush1.msra.mxu0 0.0
    %315 = vmatprep.subr.mxu0 0.0
    %316 = vmatpush1.msra.mxu0 0.0
    %317 = vmatprep.subr.mxu0 0.0
    %318 = vmatpush1.msra.mxu0 0.0
    %319 = vmatprep.subr.mxu0 0.0
    %320 = vmatpush1.msra.mxu0 0.0
    %321 = vmatprep.subr.mxu0 0.0
    %322 = vmatpush1.msra.mxu0 0.0
    %323 = vmatprep.subr.mxu0 0.0
    %324 = vmatpush1.msra.mxu0 0.0
    %325 = vmatprep.subr.mxu0 0.0
    %326 = vmatpush1.msra.mxu0 0.0
    %327 = vmatprep.subr.mxu0 0.0
    %328 = vmatpush1.msra.mxu0 0.0
    %329 = vmatprep.subr.mxu0 0.0
    %330 = vmatpush1.msra.mxu0 0.0
    %331 = vmatprep.subr.mxu0 0.0
    %332 = vmatpush1.msra.mxu0 0.0
    %333 = vmatprep.subr.mxu0 0.0
    %334 = vmatpush1.msra.mxu0 0.0
    %335 = vmatprep.subr.mxu0 0.0
    %336 = vmatpush1.msra.mxu0 0.0
    %337 = vmatprep.subr.mxu0 0.0
    %338 = vmatpush1.msra.mxu0 0.0
    %339 = vmatprep.subr.mxu0 0.0
    %340 = vmatpush1.msra.mxu0 0.0
    %341 = vmatprep.subr.mxu0 0.0
    %342 = vmatpush1.msra.mxu0 0.0
    %343 = vmatprep.subr.mxu0 0.0
    %344 = vmatpush1.msra.mxu0 0.0
    %345 = vmatprep.subr.mxu0 0.0
    %346 = vmatpush1.msra.mxu0 0.0
    %347 = vmatprep.subr.mxu0 0.0
    %348 = vmatpush1.msra.mxu0 0.0
    %349 = vmatprep.subr.mxu0 0.0
    %350 = vmatpush1.msra.mxu0 0.0
    %351 = vmatprep.subr.mxu0 0.0
    %352 = vmatpush1.msra.mxu0 0.0
    %353 = vmatprep.subr.mxu0 0.0
    %354 = vmatpush1.msra.mxu0 0.0
    %355 = vmatprep.subr.mxu0 0.0
    %356 = vmatpush1.msra.mxu0 0.0
    %357 = vmatprep.subr.mxu0 0.0
    %358 = vmatpush1.msra.mxu0 0.0
    %359 = vmatprep.subr.mxu0 0.0
    %360 = vmatpush1.msra.mxu0 0.0
    %361 = vmatprep.subr.mxu0 0.0
    %362 = vmatpush1.msra.mxu0 0.0
    %363 = vmatprep.subr.mxu0 0.0
    %364 = vmatpush1.msra.mxu0 0.0
    %365 = vmatprep.subr.mxu0 0.0
    %366 = vmatpush1.msra.mxu0 0.0
    %367 = vmatprep.mubr.f32.mxu0 0.0
    %368 = vmatmul.mubr.f32.gmra.mrb[0].mxu0 %v301
    %v369 = vpop.f32.mrb[0].mxu0
    %v370 = vadd.f32 0.0, %v369
    %v371 = vpop.f32.mrb[0].mxu0
    %372 = vdwg.mxu0
    %v373 = vadd.f32 %v166, %v370
    %v374 = vxor.u32 %v373, 2147483648
    %v375 = vmul.f32 %v374, 1.442695
    %v376 = vpow.pop %v375
    %v377 = vadd.f32 %v376, 1.0
    %v378 = vrcp.pop %v377
    %v379 = vmul.f32 1.0, %v378
    %v380 = vtanh.pop %v373
    %v381 = vmul.f32 %v379, %v291
    %383 = vrot.lane.b32.xlu0 %v380, 64
    %v384 = vpop.permute.xlu0 %383
    %v386 = vmul.f32 %v379, %v384
    %388 = vrot.lane.b32.xlu0 %v386, 32
    %v389 = vpop.permute.xlu0 %388
    %v391 = vadd.f32 %v381, %v389
    %v392 = vtanh.pop %v391
    %394 = vrot.lane.b32.xlu0 %v392, 64
    %v395 = vpop.permute.xlu0 %394
    %v397 = vmul.f32 %v379, %v395
    %398 = vmatprep.subr.mxu0 0.0
    %399 = vmatpush1.msra.mxu0 %v35
    %400 = vmatprep.subr.mxu0 0.0
    %401 = vmatpush1.msra.mxu0 %v36
    %402 = vmatprep.subr.mxu0 0.0
    %403 = vmatpush1.msra.mxu0 %v37
    %404 = vmatprep.subr.mxu0 0.0
    %405 = vmatpush1.msra.mxu0 %v38
    %406 = vmatprep.subr.mxu0 0.0
    %407 = vmatpush1.msra.mxu0 0.0
    %408 = vmatprep.subr.mxu0 0.0
    %409 = vmatpush1.msra.mxu0 0.0
    %410 = vmatprep.subr.mxu0 0.0
    %411 = vmatpush1.msra.mxu0 0.0
    %412 = vmatprep.subr.mxu0 0.0
    %413 = vmatpush1.msra.mxu0 0.0
    %414 = vmatprep.subr.mxu0 0.0
    %415 = vmatpush1.msra.mxu0 0.0
    %416 = vmatprep.subr.mxu0 0.0
    %417 = vmatpush1.msra.mxu0 0.0
    %418 = vmatprep.subr.mxu0 0.0
    %419 = vmatpush1.msra.mxu0 0.0
    %420 = vmatprep.subr.mxu0 0.0
    %421 = vmatpush1.msra.mxu0 0.0
    %422 = vmatprep.subr.mxu0 0.0
    %423 = vmatpush1.msra.mxu0 0.0
    %424 = vmatprep.subr.mxu0 0.0
    %425 = vmatpush1.msra.mxu0 0.0
    %426 = vmatprep.subr.mxu0 0.0
    %427 = vmatpush1.msra.mxu0 0.0
    %428 = vmatprep.subr.mxu0 0.0
    %429 = vmatpush1.msra.mxu0 0.0
    %430 = vmatprep.subr.mxu0 0.0
    %431 = vmatpush1.msra.mxu0 0.0
    %432 = vmatprep.subr.mxu0 0.0
    %433 = vmatpush1.msra.mxu0 0.0
    %434 = vmatprep.subr.mxu0 0.0
    %435 = vmatpush1.msra.mxu0 0.0
    %436 = vmatprep.subr.mxu0 0.0
    %437 = vmatpush1.msra.mxu0 0.0
    %438 = vmatprep.subr.mxu0 0.0
    %439 = vmatpush1.msra.mxu0 0.0
    %440 = vmatprep.subr.mxu0 0.0
    %441 = vmatpush1.msra.mxu0 0.0
    %442 = vmatprep.subr.mxu0 0.0
    %443 = vmatpush1.msra.mxu0 0.0
    %444 = vmatprep.subr.mxu0 0.0
    %445 = vmatpush1.msra.mxu0 0.0
    %446 = vmatprep.subr.mxu0 0.0
    %447 = vmatpush1.msra.mxu0 0.0
    %448 = vmatprep.subr.mxu0 0.0
    %449 = vmatpush1.msra.mxu0 0.0
    %450 = vmatprep.subr.mxu0 0.0
    %451 = vmatpush1.msra.mxu0 0.0
    %452 = vmatprep.subr.mxu0 0.0
    %453 = vmatpush1.msra.mxu0 0.0
    %454 = vmatprep.subr.mxu0 0.0
    %455 = vmatpush1.msra.mxu0 0.0
    %456 = vmatprep.subr.mxu0 0.0
    %457 = vmatpush1.msra.mxu0 0.0
    %458 = vmatprep.subr.mxu0 0.0
    %459 = vmatpush1.msra.mxu0 0.0
    %460 = vmatprep.subr.mxu0 0.0
    %461 = vmatpush1.msra.mxu0 0.0
    %462 = vmatprep.mubr.f32.mxu0 0.0
    %463 = vmatmul.mubr.f32.gmra.mrb[0].mxu0 %v301
    %v464 = vpop.f32.mrb[0].mxu0
    %v465 = vadd.f32 %v53, %v464
    %v466 = vpop.f32.mrb[0].mxu0
    %467 = vdwg.mxu0
    %468 = vmatprep.subr.mxu0 0.0
    %469 = vmatpush1.msra.mxu0 %v43
    %470 = vmatprep.subr.mxu0 0.0
    %471 = vmatpush1.msra.mxu0 %v44
    %472 = vmatprep.subr.mxu0 0.0
    %473 = vmatpush1.msra.mxu0 %v45
    %474 = vmatprep.subr.mxu0 0.0
    %475 = vmatpush1.msra.mxu0 %v46
    %476 = vmatprep.subr.mxu0 0.0
    %477 = vmatpush1.msra.mxu0 0.0
    %478 = vmatprep.subr.mxu0 0.0
    %479 = vmatpush1.msra.mxu0 0.0
    %480 = vmatprep.subr.mxu0 0.0
    %481 = vmatpush1.msra.mxu0 0.0
    %482 = vmatprep.subr.mxu0 0.0
    %483 = vmatpush1.msra.mxu0 0.0
    %484 = vmatprep.subr.mxu0 0.0
    %485 = vmatpush1.msra.mxu0 0.0
    %486 = vmatprep.subr.mxu0 0.0
    %487 = vmatpush1.msra.mxu0 0.0
    %488 = vmatprep.subr.mxu0 0.0
    %489 = vmatpush1.msra.mxu0 0.0
    %490 = vmatprep.subr.mxu0 0.0
    %491 = vmatpush1.msra.mxu0 0.0
    %492 = vmatprep.subr.mxu0 0.0
    %493 = vmatpush1.msra.mxu0 0.0
    %494 = vmatprep.subr.mxu0 0.0
    %495 = vmatpush1.msra.mxu0 0.0
    %496 = vmatprep.subr.mxu0 0.0
    %497 = vmatpush1.msra.mxu0 0.0
    %498 = vmatprep.subr.mxu0 0.0
    %499 = vmatpush1.msra.mxu0 0.0
    %500 = vmatprep.subr.mxu0 0.0
    %501 = vmatpush1.msra.mxu0 0.0
    %502 = vmatprep.subr.mxu0 0.0
    %503 = vmatpush1.msra.mxu0 0.0
    %504 = vmatprep.subr.mxu0 0.0
    %505 = vmatpush1.msra.mxu0 0.0
    %506 = vmatprep.subr.mxu0 0.0
    %507 = vmatpush1.msra.mxu0 0.0
    %508 = vmatprep.subr.mxu0 0.0
    %509 = vmatpush1.msra.mxu0 0.0
    %510 = vmatprep.subr.mxu0 0.0
    %511 = vmatpush1.msra.mxu0 0.0
    %512 = vmatprep.subr.mxu0 0.0
    %513 = vmatpush1.msra.mxu0 0.0
    %514 = vmatprep.subr.mxu0 0.0
    %515 = vmatpush1.msra.mxu0 0.0
    %516 = vmatprep.subr.mxu0 0.0
    %517 = vmatpush1.msra.mxu0 0.0
    %518 = vmatprep.subr.mxu0 0.0
    %519 = vmatpush1.msra.mxu0 0.0
    %520 = vmatprep.subr.mxu0 0.0
    %521 = vmatpush1.msra.mxu0 0.0
    %522 = vmatprep.subr.mxu0 0.0
    %523 = vmatpush1.msra.mxu0 0.0
    %524 = vmatprep.subr.mxu0 0.0
    %525 = vmatpush1.msra.mxu0 0.0
    %526 = vmatprep.subr.mxu0 0.0
    %527 = vmatpush1.msra.mxu0 0.0
    %528 = vmatprep.subr.mxu0 0.0
    %529 = vmatpush1.msra.mxu0 0.0
    %530 = vmatprep.subr.mxu0 0.0
    %531 = vmatpush1.msra.mxu0 0.0
    %532 = vmatprep.mubr.f32.mxu0 0.0
    %533 = vmatmul.mubr.f32.gmra.mrb[0].mxu0 %v201
    %v534 = vpop.f32.mrb[0].mxu0
    %v535 = vadd.f32 0.0, %v534
    %v536 = vpop.f32.mrb[0].mxu0
    %537 = vdwg.mxu0
    %v538 = vadd.f32 %v465, %v535
    %v539 = vxor.u32 %v538, 2147483648
    %v540 = vmul.f32 %v539, 1.442695
    %v541 = vpow.pop %v540
    %v542 = vadd.f32 %v541, 1.0
    %v543 = vrcp.pop %v542
    %v544 = vmul.f32 1.0, %v543
    %v545 = vtanh.pop %v538
    %v546 = vmul.f32 %v544, 0.0
    %548 = vrot.lane.b32.xlu0 %v545, 64
    %v549 = vpop.permute.xlu0 %548
    %v551 = vmul.f32 %v544, %v549
    %553 = vrot.lane.b32.xlu0 %v551, 32
    %v554 = vpop.permute.xlu0 %553
    %v556 = vadd.f32 %v546, %v554
    %v557 = vtanh.pop %v556
    %559 = vrot.lane.b32.xlu0 %v557, 64
    %v560 = vpop.permute.xlu0 %559
    %v562 = vmul.f32 %v544, %v560
    %564 = vrot.lane.b32.xlu0 %v397, 32
    %v565 = vpop.permute.xlu0 %564
    %v566 = vsel %vm199, %v565, 0
    %568 = vmatprep.subr.mxu0 0.0
    %569 = vmatpush1.msra.mxu0 %v39
    %570 = vmatprep.subr.mxu0 0.0
    %571 = vmatpush1.msra.mxu0 %v40
    %572 = vmatprep.subr.mxu0 0.0
    %573 = vmatpush1.msra.mxu0 %v41
    %574 = vmatprep.subr.mxu0 0.0
    %575 = vmatpush1.msra.mxu0 %v42
    %576 = vmatprep.subr.mxu0 0.0
    %577 = vmatpush1.msra.mxu0 0.0
    %578 = vmatprep.subr.mxu0 0.0
    %579 = vmatpush1.msra.mxu0 0.0
    %580 = vmatprep.subr.mxu0 0.0
    %581 = vmatpush1.msra.mxu0 0.0
    %582 = vmatprep.subr.mxu0 0.0
    %583 = vmatpush1.msra.mxu0 0.0
    %584 = vmatprep.subr.mxu0 0.0
    %585 = vmatpush1.msra.mxu0 0.0
    %586 = vmatprep.subr.mxu0 0.0
    %587 = vmatpush1.msra.mxu0 0.0
    %588 = vmatprep.subr.mxu0 0.0
    %589 = vmatpush1.msra.mxu0 0.0
    %590 = vmatprep.subr.mxu0 0.0
    %591 = vmatpush1.msra.mxu0 0.0
    %592 = vmatprep.subr.mxu0 0.0
    %593 = vmatpush1.msra.mxu0 0.0
    %594 = vmatprep.subr.mxu0 0.0
    %595 = vmatpush1.msra.mxu0 0.0
    %596 = vmatprep.subr.mxu0 0.0
    %597 = vmatpush1.msra.mxu0 0.0
    %598 = vmatprep.subr.mxu0 0.0
    %599 = vmatpush1.msra.mxu0 0.0
    %600 = vmatprep.subr.mxu0 0.0
    %601 = vmatpush1.msra.mxu0 0.0
    %602 = vmatprep.subr.mxu0 0.0
    %603 = vmatpush1.msra.mxu0 0.0
    %604 = vmatprep.subr.mxu0 0.0
    %605 = vmatpush1.msra.mxu0 0.0
    %606 = vmatprep.subr.mxu0 0.0
    %607 = vmatpush1.msra.mxu0 0.0
    %608 = vmatprep.subr.mxu0 0.0
    %609 = vmatpush1.msra.mxu0 0.0
    %610 = vmatprep.subr.mxu0 0.0
    %611 = vmatpush1.msra.mxu0 0.0
    %612 = vmatprep.subr.mxu0 0.0
    %613 = vmatpush1.msra.mxu0 0.0
    %614 = vmatprep.subr.mxu0 0.0
    %615 = vmatpush1.msra.mxu0 0.0
    %616 = vmatprep.subr.mxu0 0.0
    %617 = vmatpush1.msra.mxu0 0.0
    %618 = vmatprep.subr.mxu0 0.0
    %619 = vmatpush1.msra.mxu0 0.0
    %620 = vmatprep.subr.mxu0 0.0
    %621 = vmatpush1.msra.mxu0 0.0
    %622 = vmatprep.subr.mxu0 0.0
    %623 = vmatpush1.msra.mxu0 0.0
    %624 = vmatprep.subr.mxu0 0.0
    %625 = vmatpush1.msra.mxu0 0.0
    %626 = vmatprep.subr.mxu0 0.0
    %627 = vmatpush1.msra.mxu0 0.0
    %628 = vmatprep.subr.mxu0 0.0
    %629 = vmatpush1.msra.mxu0 0.0
    %630 = vmatprep.subr.mxu0 0.0
    %631 = vmatpush1.msra.mxu0 0.0
    %632 = vmatprep.mubr.f32.mxu0 0.0
    %633 = vmatmul.mubr.f32.gmra.mrb[0].mxu0 %v566
    %v634 = vpop.f32.mrb[0].mxu0
    %v635 = vadd.f32 0.0, %v634
    %v636 = vpop.f32.mrb[0].mxu0
    %637 = vdwg.mxu0
    %v638 = vadd.f32 %v171, %v635
    %v639 = vxor.u32 %v638, 2147483648
    %v640 = vmul.f32 %v639, 1.442695
    %v641 = vpow.pop %v640
    %v642 = vadd.f32 %v641, 1.0
    %v643 = vrcp.pop %v642
    %v644 = vmul.f32 1.0, %v643
    %v645 = vtanh.pop %v638
    %v646 = vmul.f32 %v644, %v391
    %648 = vrot.lane.b32.xlu0 %v645, 64
    %v649 = vpop.permute.xlu0 %648
    %v651 = vmul.f32 %v644, %v649
    %653 = vrot.lane.b32.xlu0 %v651, 32
    %v654 = vpop.permute.xlu0 %653
    %v656 = vadd.f32 %v646, %v654
    %v657 = vtanh.pop %v656
    %659 = vrot.lane.b32.xlu0 %v657, 64
    %v660 = vpop.permute.xlu0 %659
    %v662 = vmul.f32 %v644, %v660
    %663 = vmatprep.subr.mxu0 0.0
    %664 = vmatpush1.msra.mxu0 %v35
    %665 = vmatprep.subr.mxu0 0.0
    %666 = vmatpush1.msra.mxu0 %v36
    %667 = vmatprep.subr.mxu0 0.0
    %668 = vmatpush1.msra.mxu0 %v37
    %669 = vmatprep.subr.mxu0 0.0
    %670 = vmatpush1.msra.mxu0 %v38
    %671 = vmatprep.subr.mxu0 0.0
    %672 = vmatpush1.msra.mxu0 0.0
    %673 = vmatprep.subr.mxu0 0.0
    %674 = vmatpush1.msra.mxu0 0.0
    %675 = vmatprep.subr.mxu0 0.0
    %676 = vmatpush1.msra.mxu0 0.0
    %677 = vmatprep.subr.mxu0 0.0
    %678 = vmatpush1.msra.mxu0 0.0
    %679 = vmatprep.subr.mxu0 0.0
    %680 = vmatpush1.msra.mxu0 0.0
    %681 = vmatprep.subr.mxu0 0.0
    %682 = vmatpush1.msra.mxu0 0.0
    %683 = vmatprep.subr.mxu0 0.0
    %684 = vmatpush1.msra.mxu0 0.0
    %685 = vmatprep.subr.mxu0 0.0
    %686 = vmatpush1.msra.mxu0 0.0
    %687 = vmatprep.subr.mxu0 0.0
    %688 = vmatpush1.msra.mxu0 0.0
    %689 = vmatprep.subr.mxu0 0.0
    %690 = vmatpush1.msra.mxu0 0.0
    %691 = vmatprep.subr.mxu0 0.0
    %692 = vmatpush1.msra.mxu0 0.0
    %693 = vmatprep.subr.mxu0 0.0
    %694 = vmatpush1.msra.mxu0 0.0
    %695 = vmatprep.subr.mxu0 0.0
    %696 = vmatpush1.msra.mxu0 0.0
    %697 = vmatprep.subr.mxu0 0.0
    %698 = vmatpush1.msra.mxu0 0.0
    %699 = vmatprep.subr.mxu0 0.0
    %700 = vmatpush1.msra.mxu0 0.0
    %701 = vmatprep.subr.mxu0 0.0
    %702 = vmatpush1.msra.mxu0 0.0
    %703 = vmatprep.subr.mxu0 0.0
    %704 = vmatpush1.msra.mxu0 0.0
    %705 = vmatprep.subr.mxu0 0.0
    %706 = vmatpush1.msra.mxu0 0.0
    %707 = vmatprep.subr.mxu0 0.0
    %708 = vmatpush1.msra.mxu0 0.0
    %709 = vmatprep.subr.mxu0 0.0
    %710 = vmatpush1.msra.mxu0 0.0
    %711 = vmatprep.subr.mxu0 0.0
    %712 = vmatpush1.msra.mxu0 0.0
    %713 = vmatprep.subr.mxu0 0.0
    %714 = vmatpush1.msra.mxu0 0.0
    %715 = vmatprep.subr.mxu0 0.0
    %716 = vmatpush1.msra.mxu0 0.0
    %717 = vmatprep.subr.mxu0 0.0
    %718 = vmatpush1.msra.mxu0 0.0
    %719 = vmatprep.subr.mxu0 0.0
    %720 = vmatpush1.msra.mxu0 0.0
    %721 = vmatprep.subr.mxu0 0.0
    %722 = vmatpush1.msra.mxu0 0.0
    %723 = vmatprep.subr.mxu0 0.0
    %724 = vmatpush1.msra.mxu0 0.0
    %725 = vmatprep.subr.mxu0 0.0
    %726 = vmatpush1.msra.mxu0 0.0
    %727 = vmatprep.mubr.f32.mxu0 0.0
    %728 = vmatmul.mubr.f32.gmra.mrb[0].mxu0 %v566
    %v729 = vpop.f32.mrb[0].mxu0
    %v730 = vadd.f32 %v53, %v729
    %v731 = vpop.f32.mrb[0].mxu0
    %732 = vdwg.mxu0
    %734 = vrot.lane.b32.xlu0 %v562, 32
    %v735 = vpop.permute.xlu0 %734
    %v736 = vsel %vm199, %v735, 0
    %738 = vmatprep.subr.mxu0 0.0
    %739 = vmatpush1.msra.mxu0 %v43
    %740 = vmatprep.subr.mxu0 0.0
    %741 = vmatpush1.msra.mxu0 %v44
    %742 = vmatprep.subr.mxu0 0.0
    %743 = vmatpush1.msra.mxu0 %v45
    %744 = vmatprep.subr.mxu0 0.0
    %745 = vmatpush1.msra.mxu0 %v46
    %746 = vmatprep.subr.mxu0 0.0
    %747 = vmatpush1.msra.mxu0 0.0
    %748 = vmatprep.subr.mxu0 0.0
    %749 = vmatpush1.msra.mxu0 0.0
    %750 = vmatprep.subr.mxu0 0.0
    %751 = vmatpush1.msra.mxu0 0.0
    %752 = vmatprep.subr.mxu0 0.0
    %753 = vmatpush1.msra.mxu0 0.0
    %754 = vmatprep.subr.mxu0 0.0
    %755 = vmatpush1.msra.mxu0 0.0
    %756 = vmatprep.subr.mxu0 0.0
    %757 = vmatpush1.msra.mxu0 0.0
    %758 = vmatprep.subr.mxu0 0.0
    %759 = vmatpush1.msra.mxu0 0.0
    %760 = vmatprep.subr.mxu0 0.0
    %761 = vmatpush1.msra.mxu0 0.0
    %762 = vmatprep.subr.mxu0 0.0
    %763 = vmatpush1.msra.mxu0 0.0
    %764 = vmatprep.subr.mxu0 0.0
    %765 = vmatpush1.msra.mxu0 0.0
    %766 = vmatprep.subr.mxu0 0.0
    %767 = vmatpush1.msra.mxu0 0.0
    %768 = vmatprep.subr.mxu0 0.0
    %769 = vmatpush1.msra.mxu0 0.0
    %770 = vmatprep.subr.mxu0 0.0
    %771 = vmatpush1.msra.mxu0 0.0
    %772 = vmatprep.subr.mxu0 0.0
    %773 = vmatpush1.msra.mxu0 0.0
    %774 = vmatprep.subr.mxu0 0.0
    %775 = vmatpush1.msra.mxu0 0.0
    %776 = vmatprep.subr.mxu0 0.0
    %777 = vmatpush1.msra.mxu0 0.0
    %778 = vmatprep.subr.mxu0 0.0
    %779 = vmatpush1.msra.mxu0 0.0
    %780 = vmatprep.subr.mxu0 0.0
    %781 = vmatpush1.msra.mxu0 0.0
    %782 = vmatprep.subr.mxu0 0.0
    %783 = vmatpush1.msra.mxu0 0.0
    %784 = vmatprep.subr.mxu0 0.0
    %785 = vmatpush1.msra.mxu0 0.0
    %786 = vmatprep.subr.mxu0 0.0
    %787 = vmatpush1.msra.mxu0 0.0
    %788 = vmatprep.subr.mxu0 0.0
    %789 = vmatpush1.msra.mxu0 0.0
    %790 = vmatprep.subr.mxu0 0.0
    %791 = vmatpush1.msra.mxu0 0.0
    %792 = vmatprep.subr.mxu0 0.0
    %793 = vmatpush1.msra.mxu0 0.0
    %794 = vmatprep.subr.mxu0 0.0
    %795 = vmatpush1.msra.mxu0 0.0
    %796 = vmatprep.subr.mxu0 0.0
    %797 = vmatpush1.msra.mxu0 0.0
    %798 = vmatprep.subr.mxu0 0.0
    %799 = vmatpush1.msra.mxu0 0.0
    %800 = vmatprep.subr.mxu0 0.0
    %801 = vmatpush1.msra.mxu0 0.0
    %802 = vmatprep.mubr.f32.mxu0 0.0
    %803 = vmatmul.mubr.f32.gmra.mrb[0].mxu0 %v736
    %v804 = vpop.f32.mrb[0].mxu0
    %v805 = vadd.f32 0.0, %v804
    %v806 = vpop.f32.mrb[0].mxu0
    %807 = vdwg.mxu0
    %v808 = vadd.f32 %v730, %v805
    %v809 = vxor.u32 %v808, 2147483648
    %v810 = vmul.f32 %v809, 1.442695
    %v811 = vpow.pop %v810
    %v812 = vadd.f32 %v811, 1.0
    %v813 = vrcp.pop %v812
    %v814 = vmul.f32 1.0, %v813
    %v815 = vtanh.pop %v808
    %v816 = vmul.f32 %v814, %v556
    %818 = vrot.lane.b32.xlu0 %v815, 64
    %v819 = vpop.permute.xlu0 %818
    %v821 = vmul.f32 %v814, %v819
    %823 = vrot.lane.b32.xlu0 %v821, 32
    %v824 = vpop.permute.xlu0 %823
    %v826 = vadd.f32 %v816, %v824
    %v827 = vtanh.pop %v826
    %829 = vrot.lane.b32.xlu0 %v827, 64
    %v830 = vpop.permute.xlu0 %829
    %v832 = vmul.f32 %v814, %v830
    %834 = vrot.lane.b32.xlu0 %v662, 32
    %v835 = vpop.permute.xlu0 %834
    %v836 = vsel %vm199, %v835, 0
    %838 = vmatprep.subr.mxu0 0.0
    %839 = vmatpush1.msra.mxu0 %v39
    %840 = vmatprep.subr.mxu0 0.0
    %841 = vmatpush1.msra.mxu0 %v40
    %842 = vmatprep.subr.mxu0 0.0
    %843 = vmatpush1.msra.mxu0 %v41
    %844 = vmatprep.subr.mxu0 0.0
    %845 = vmatpush1.msra.mxu0 %v42
    %846 = vmatprep.subr.mxu0 0.0
    %847 = vmatpush1.msra.mxu0 0.0
    %848 = vmatprep.subr.mxu0 0.0
    %849 = vmatpush1.msra.mxu0 0.0
    %850 = vmatprep.subr.mxu0 0.0
    %851 = vmatpush1.msra.mxu0 0.0
    %852 = vmatprep.subr.mxu0 0.0
    %853 = vmatpush1.msra.mxu0 0.0
    %854 = vmatprep.subr.mxu0 0.0
    %855 = vmatpush1.msra.mxu0 0.0
    %856 = vmatprep.subr.mxu0 0.0
    %857 = vmatpush1.msra.mxu0 0.0
    %858 = vmatprep.subr.mxu0 0.0
    %859 = vmatpush1.msra.mxu0 0.0
    %860 = vmatprep.subr.mxu0 0.0
    %861 = vmatpush1.msra.mxu0 0.0
    %862 = vmatprep.subr.mxu0 0.0
    %863 = vmatpush1.msra.mxu0 0.0
    %864 = vmatprep.subr.mxu0 0.0
    %865 = vmatpush1.msra.mxu0 0.0
    %866 = vmatprep.subr.mxu0 0.0
    %867 = vmatpush1.msra.mxu0 0.0
    %868 = vmatprep.subr.mxu0 0.0
    %869 = vmatpush1.msra.mxu0 0.0
    %870 = vmatprep.subr.mxu0 0.0
    %871 = vmatpush1.msra.mxu0 0.0
    %872 = vmatprep.subr.mxu0 0.0
    %873 = vmatpush1.msra.mxu0 0.0
    %874 = vmatprep.subr.mxu0 0.0
    %875 = vmatpush1.msra.mxu0 0.0
    %876 = vmatprep.subr.mxu0 0.0
    %877 = vmatpush1.msra.mxu0 0.0
    %878 = vmatprep.subr.mxu0 0.0
    %879 = vmatpush1.msra.mxu0 0.0
    %880 = vmatprep.subr.mxu0 0.0
    %881 = vmatpush1.msra.mxu0 0.0
    %882 = vmatprep.subr.mxu0 0.0
    %883 = vmatpush1.msra.mxu0 0.0
    %884 = vmatprep.subr.mxu0 0.0
    %885 = vmatpush1.msra.mxu0 0.0
    %886 = vmatprep.subr.mxu0 0.0
    %887 = vmatpush1.msra.mxu0 0.0
    %888 = vmatprep.subr.mxu0 0.0
    %889 = vmatpush1.msra.mxu0 0.0
    %890 = vmatprep.subr.mxu0 0.0
    %891 = vmatpush1.msra.mxu0 0.0
    %892 = vmatprep.subr.mxu0 0.0
    %893 = vmatpush1.msra.mxu0 0.0
    %894 = vmatprep.subr.mxu0 0.0
    %895 = vmatpush1.msra.mxu0 0.0
    %896 = vmatprep.subr.mxu0 0.0
    %897 = vmatpush1.msra.mxu0 0.0
    %898 = vmatprep.subr.mxu0 0.0
    %899 = vmatpush1.msra.mxu0 0.0
    %900 = vmatprep.subr.mxu0 0.0
    %901 = vmatpush1.msra.mxu0 0.0
    %902 = vmatprep.mubr.f32.mxu0 0.0
    %903 = vmatmul.mubr.f32.gmra.mrb[0].mxu0 %v836
    %v904 = vpop.f32.mrb[0].mxu0
    %v905 = vadd.f32 0.0, %v904
    %v906 = vpop.f32.mrb[0].mxu0
    %907 = vdwg.mxu0
    %v908 = vadd.f32 %v176, %v905
    %v909 = vxor.u32 %v908, 2147483648
    %v910 = vmul.f32 %v909, 1.442695
    %v911 = vpow.pop %v910
    %v912 = vadd.f32 %v911, 1.0
    %v913 = vrcp.pop %v912
    %v914 = vmul.f32 1.0, %v913
    %v915 = vtanh.pop %v908
    %v916 = vmul.f32 %v914, %v656
    %918 = vrot.lane.b32.xlu0 %v915, 64
    %v919 = vpop.permute.xlu0 %918
    %v921 = vmul.f32 %v914, %v919
    %923 = vrot.lane.b32.xlu0 %v921, 32
    %v924 = vpop.permute.xlu0 %923
    %v926 = vadd.f32 %v916, %v924
    %v927 = vtanh.pop %v926
    %929 = vrot.lane.b32.xlu0 %v927, 64
    %v930 = vpop.permute.xlu0 %929
    %v932 = vmul.f32 %v914, %v930
    %933 = vmatprep.subr.mxu0 0.0
    %934 = vmatpush1.msra.mxu0 %v35
    %935 = vmatprep.subr.mxu0 0.0
    %936 = vmatpush1.msra.mxu0 %v36
    %937 = vmatprep.subr.mxu0 0.0
    %938 = vmatpush1.msra.mxu0 %v37
    %939 = vmatprep.subr.mxu0 0.0
    %940 = vmatpush1.msra.mxu0 %v38
    %941 = vmatprep.subr.mxu0 0.0
    %942 = vmatpush1.msra.mxu0 0.0
    %943 = vmatprep.subr.mxu0 0.0
    %944 = vmatpush1.msra.mxu0 0.0
    %945 = vmatprep.subr.mxu0 0.0
    %946 = vmatpush1.msra.mxu0 0.0
    %947 = vmatprep.subr.mxu0 0.0
    %948 = vmatpush1.msra.mxu0 0.0
    %949 = vmatprep.subr.mxu0 0.0
    %950 = vmatpush1.msra.mxu0 0.0
    %951 = vmatprep.subr.mxu0 0.0
    %952 = vmatpush1.msra.mxu0 0.0
    %953 = vmatprep.subr.mxu0 0.0
    %954 = vmatpush1.msra.mxu0 0.0
    %955 = vmatprep.subr.mxu0 0.0
    %956 = vmatpush1.msra.mxu0 0.0
    %957 = vmatprep.subr.mxu0 0.0
    %958 = vmatpush1.msra.mxu0 0.0
    %959 = vmatprep.subr.mxu0 0.0
    %960 = vmatpush1.msra.mxu0 0.0
    %961 = vmatprep.subr.mxu0 0.0
    %962 = vmatpush1.msra.mxu0 0.0
    %963 = vmatprep.subr.mxu0 0.0
    %964 = vmatpush1.msra.mxu0 0.0
    %965 = vmatprep.subr.mxu0 0.0
    %966 = vmatpush1.msra.mxu0 0.0
    %967 = vmatprep.subr.mxu0 0.0
    %968 = vmatpush1.msra.mxu0 0.0
    %969 = vmatprep.subr.mxu0 0.0
    %970 = vmatpush1.msra.mxu0 0.0
    %971 = vmatprep.subr.mxu0 0.0
    %972 = vmatpush1.msra.mxu0 0.0
    %973 = vmatprep.subr.mxu0 0.0
    %974 = vmatpush1.msra.mxu0 0.0
    %975 = vmatprep.subr.mxu0 0.0
    %976 = vmatpush1.msra.mxu0 0.0
    %977 = vmatprep.subr.mxu0 0.0
    %978 = vmatpush1.msra.mxu0 0.0
    %979 = vmatprep.subr.mxu0 0.0
    %980 = vmatpush1.msra.mxu0 0.0
    %981 = vmatprep.subr.mxu0 0.0
    %982 = vmatpush1.msra.mxu0 0.0
    %983 = vmatprep.subr.mxu0 0.0
    %984 = vmatpush1.msra.mxu0 0.0
    %985 = vmatprep.subr.mxu0 0.0
    %986 = vmatpush1.msra.mxu0 0.0
    %987 = vmatprep.subr.mxu0 0.0
    %988 = vmatpush1.msra.mxu0 0.0
    %989 = vmatprep.subr.mxu0 0.0
    %990 = vmatpush1.msra.mxu0 0.0
    %991 = vmatprep.subr.mxu0 0.0
    %992 = vmatpush1.msra.mxu0 0.0
    %993 = vmatprep.subr.mxu0 0.0
    %994 = vmatpush1.msra.mxu0 0.0
    %995 = vmatprep.subr.mxu0 0.0
    %996 = vmatpush1.msra.mxu0 0.0
    %997 = vmatprep.mubr.f32.mxu0 0.0
    %998 = vmatmul.mubr.f32.gmra.mrb[0].mxu0 %v836
    %v999 = vpop.f32.mrb[0].mxu0
    %v1000 = vadd.f32 %v53, %v999
    %v1001 = vpop.f32.mrb[0].mxu0
    %1002 = vdwg.mxu0
    %1004 = vrot.lane.b32.xlu0 %v832, 32
    %v1005 = vpop.permute.xlu0 %1004
    %v1006 = vsel %vm199, %v1005, 0
    %1008 = vmatprep.subr.mxu0 0.0
    %1009 = vmatpush1.msra.mxu0 %v43
    %1010 = vmatprep.subr.mxu0 0.0
    %1011 = vmatpush1.msra.mxu0 %v44
    %1012 = vmatprep.subr.mxu0 0.0
    %1013 = vmatpush1.msra.mxu0 %v45
    %1014 = vmatprep.subr.mxu0 0.0
    %1015 = vmatpush1.msra.mxu0 %v46
    %1016 = vmatprep.subr.mxu0 0.0
    %1017 = vmatpush1.msra.mxu0 0.0
    %1018 = vmatprep.subr.mxu0 0.0
    %1019 = vmatpush1.msra.mxu0 0.0
    %1020 = vmatprep.subr.mxu0 0.0
    %1021 = vmatpush1.msra.mxu0 0.0
    %1022 = vmatprep.subr.mxu0 0.0
    %1023 = vmatpush1.msra.mxu0 0.0
    %1024 = vmatprep.subr.mxu0 0.0
    %1025 = vmatpush1.msra.mxu0 0.0
    %1026 = vmatprep.subr.mxu0 0.0
    %1027 = vmatpush1.msra.mxu0 0.0
    %1028 = vmatprep.subr.mxu0 0.0
    %1029 = vmatpush1.msra.mxu0 0.0
    %1030 = vmatprep.subr.mxu0 0.0
    %1031 = vmatpush1.msra.mxu0 0.0
    %1032 = vmatprep.subr.mxu0 0.0
    %1033 = vmatpush1.msra.mxu0 0.0
    %1034 = vmatprep.subr.mxu0 0.0
    %1035 = vmatpush1.msra.mxu0 0.0
    %1036 = vmatprep.subr.mxu0 0.0
    %1037 = vmatpush1.msra.mxu0 0.0
    %1038 = vmatprep.subr.mxu0 0.0
    %1039 = vmatpush1.msra.mxu0 0.0
    %1040 = vmatprep.subr.mxu0 0.0
    %1041 = vmatpush1.msra.mxu0 0.0
    %1042 = vmatprep.subr.mxu0 0.0
    %1043 = vmatpush1.msra.mxu0 0.0
    %1044 = vmatprep.subr.mxu0 0.0
    %1045 = vmatpush1.msra.mxu0 0.0
    %1046 = vmatprep.subr.mxu0 0.0
    %1047 = vmatpush1.msra.mxu0 0.0
    %1048 = vmatprep.subr.mxu0 0.0
    %1049 = vmatpush1.msra.mxu0 0.0
    %1050 = vmatprep.subr.mxu0 0.0
    %1051 = vmatpush1.msra.mxu0 0.0
    %1052 = vmatprep.subr.mxu0 0.0
    %1053 = vmatpush1.msra.mxu0 0.0
    %1054 = vmatprep.subr.mxu0 0.0
    %1055 = vmatpush1.msra.mxu0 0.0
    %1056 = vmatprep.subr.mxu0 0.0
    %1057 = vmatpush1.msra.mxu0 0.0
    %1058 = vmatprep.subr.mxu0 0.0
    %1059 = vmatpush1.msra.mxu0 0.0
    %1060 = vmatprep.subr.mxu0 0.0
    %1061 = vmatpush1.msra.mxu0 0.0
    %1062 = vmatprep.subr.mxu0 0.0
    %1063 = vmatpush1.msra.mxu0 0.0
    %1064 = vmatprep.subr.mxu0 0.0
    %1065 = vmatpush1.msra.mxu0 0.0
    %1066 = vmatprep.subr.mxu0 0.0
    %1067 = vmatpush1.msra.mxu0 0.0
    %1068 = vmatprep.subr.mxu0 0.0
    %1069 = vmatpush1.msra.mxu0 0.0
    %1070 = vmatprep.subr.mxu0 0.0
    %1071 = vmatpush1.msra.mxu0 0.0
    %1072 = vmatprep.mubr.f32.mxu0 0.0
    %1073 = vmatmul.mubr.f32.gmra.mrb[0].mxu0 %v1006
    %v1074 = vpop.f32.mrb[0].mxu0
    %v1075 = vadd.f32 0.0, %v1074
    %v1076 = vpop.f32.mrb[0].mxu0
    %1077 = vdwg.mxu0
    %v1078 = vadd.f32 %v1000, %v1075
    %v1079 = vxor.u32 %v1078, 2147483648
    %v1080 = vmul.f32 %v1079, 1.442695
    %v1081 = vpow.pop %v1080
    %v1082 = vadd.f32 %v1081, 1.0
    %v1083 = vrcp.pop %v1082
    %v1084 = vmul.f32 1.0, %v1083
    %v1085 = vtanh.pop %v1078
    %v1086 = vmul.f32 %v1084, %v826
    %1088 = vrot.lane.b32.xlu0 %v1085, 64
    %v1089 = vpop.permute.xlu0 %1088
    %v1091 = vmul.f32 %v1084, %v1089
    %1093 = vrot.lane.b32.xlu0 %v1091, 32
    %v1094 = vpop.permute.xlu0 %1093
    %v1096 = vadd.f32 %v1086, %v1094
    %v1097 = vtanh.pop %v1096
    %1099 = vrot.lane.b32.xlu0 %v1097, 64
    %v1100 = vpop.permute.xlu0 %1099
    %v1102 = vmul.f32 %v1084, %v1100
    %1104 = vrot.lane.b32.xlu0 %v932, 32
    %v1105 = vpop.permute.xlu0 %1104
    %v1106 = vsel %vm199, %v1105, 0
    %1108 = vmatprep.subr.mxu0 0.0
    %1109 = vmatpush1.msra.mxu0 %v39
    %1110 = vmatprep.subr.mxu0 0.0
    %1111 = vmatpush1.msra.mxu0 %v40
    %1112 = vmatprep.subr.mxu0 0.0
    %1113 = vmatpush1.msra.mxu0 %v41
    %1114 = vmatprep.subr.mxu0 0.0
    %1115 = vmatpush1.msra.mxu0 %v42
    %1116 = vmatprep.subr.mxu0 0.0
    %1117 = vmatpush1.msra.mxu0 0.0
    %1118 = vmatprep.subr.mxu0 0.0
    %1119 = vmatpush1.msra.mxu0 0.0
    %1120 = vmatprep.subr.mxu0 0.0
    %1121 = vmatpush1.msra.mxu0 0.0
    %1122 = vmatprep.subr.mxu0 0.0
    %1123 = vmatpush1.msra.mxu0 0.0
    %1124 = vmatprep.subr.mxu0 0.0
    %1125 = vmatpush1.msra.mxu0 0.0
    %1126 = vmatprep.subr.mxu0 0.0
    %1127 = vmatpush1.msra.mxu0 0.0
    %1128 = vmatprep.subr.mxu0 0.0
    %1129 = vmatpush1.msra.mxu0 0.0
    %1130 = vmatprep.subr.mxu0 0.0
    %1131 = vmatpush1.msra.mxu0 0.0
    %1132 = vmatprep.subr.mxu0 0.0
    %1133 = vmatpush1.msra.mxu0 0.0
    %1134 = vmatprep.subr.mxu0 0.0
    %1135 = vmatpush1.msra.mxu0 0.0
    %1136 = vmatprep.subr.mxu0 0.0
    %1137 = vmatpush1.msra.mxu0 0.0
    %1138 = vmatprep.subr.mxu0 0.0
    %1139 = vmatpush1.msra.mxu0 0.0
    %1140 = vmatprep.subr.mxu0 0.0
    %1141 = vmatpush1.msra.mxu0 0.0
    %1142 = vmatprep.subr.mxu0 0.0
    %1143 = vmatpush1.msra.mxu0 0.0
    %1144 = vmatprep.subr.mxu0 0.0
    %1145 = vmatpush1.msra.mxu0 0.0
    %1146 = vmatprep.subr.mxu0 0.0
    %1147 = vmatpush1.msra.mxu0 0.0
    %1148 = vmatprep.subr.mxu0 0.0
    %1149 = vmatpush1.msra.mxu0 0.0
    %1150 = vmatprep.subr.mxu0 0.0
    %1151 = vmatpush1.msra.mxu0 0.0
    %1152 = vmatprep.subr.mxu0 0.0
    %1153 = vmatpush1.msra.mxu0 0.0
    %1154 = vmatprep.subr.mxu0 0.0
    %1155 = vmatpush1.msra.mxu0 0.0
    %1156 = vmatprep.subr.mxu0 0.0
    %1157 = vmatpush1.msra.mxu0 0.0
    %1158 = vmatprep.subr.mxu0 0.0
    %1159 = vmatpush1.msra.mxu0 0.0
    %1160 = vmatprep.subr.mxu0 0.0
    %1161 = vmatpush1.msra.mxu0 0.0
    %1162 = vmatprep.subr.mxu0 0.0
    %1163 = vmatpush1.msra.mxu0 0.0
    %1164 = vmatprep.subr.mxu0 0.0
    %1165 = vmatpush1.msra.mxu0 0.0
    %1166 = vmatprep.subr.mxu0 0.0
    %1167 = vmatpush1.msra.mxu0 0.0
    %1168 = vmatprep.subr.mxu0 0.0
    %1169 = vmatpush1.msra.mxu0 0.0
    %1170 = vmatprep.subr.mxu0 0.0
    %1171 = vmatpush1.msra.mxu0 0.0
    %1172 = vmatprep.mubr.f32.mxu0 0.0
    %1173 = vmatmul.mubr.f32.gmra.mrb[0].mxu0 %v1106
    %v1174 = vpop.f32.mrb[0].mxu0
    %v1175 = vadd.f32 0.0, %v1174
    %v1176 = vpop.f32.mrb[0].mxu0
    %1177 = vdwg.mxu0
    %v1178 = vadd.f32 %v181, %v1175
    %v1179 = vxor.u32 %v1178, 2147483648
    %v1180 = vmul.f32 %v1179, 1.442695
    %v1181 = vpow.pop %v1180
    %v1182 = vadd.f32 %v1181, 1.0
    %v1183 = vrcp.pop %v1182
    %v1184 = vmul.f32 1.0, %v1183
    %v1185 = vtanh.pop %v1178
    %v1186 = vmul.f32 %v1184, %v926
    %1188 = vrot.lane.b32.xlu0 %v1185, 64
    %v1189 = vpop.permute.xlu0 %1188
    %v1191 = vmul.f32 %v1184, %v1189
    %1193 = vrot.lane.b32.xlu0 %v1191, 32
    %v1194 = vpop.permute.xlu0 %1193
    %v1196 = vadd.f32 %v1186, %v1194
    %v1197 = vtanh.pop %v1196
    %1199 = vrot.lane.b32.xlu0 %v1197, 64
    %v1200 = vpop.permute.xlu0 %1199
    %v1202 = vmul.f32 %v1184, %v1200
    %1203 = vmatprep.subr.mxu0 0.0
    %1204 = vmatpush1.msra.mxu0 %v35
    %1205 = vmatprep.subr.mxu0 0.0
    %1206 = vmatpush1.msra.mxu0 %v36
    %1207 = vmatprep.subr.mxu0 0.0
    %1208 = vmatpush1.msra.mxu0 %v37
    %1209 = vmatprep.subr.mxu0 0.0
    %1210 = vmatpush1.msra.mxu0 %v38
    %1211 = vmatprep.subr.mxu0 0.0
    %1212 = vmatpush1.msra.mxu0 0.0
    %1213 = vmatprep.subr.mxu0 0.0
    %1214 = vmatpush1.msra.mxu0 0.0
    %1215 = vmatprep.subr.mxu0 0.0
    %1216 = vmatpush1.msra.mxu0 0.0
    %1217 = vmatprep.subr.mxu0 0.0
    %1218 = vmatpush1.msra.mxu0 0.0
    %1219 = vmatprep.subr.mxu0 0.0
    %1220 = vmatpush1.msra.mxu0 0.0
    %1221 = vmatprep.subr.mxu0 0.0
    %1222 = vmatpush1.msra.mxu0 0.0
    %1223 = vmatprep.subr.mxu0 0.0
    %1224 = vmatpush1.msra.mxu0 0.0
    %1225 = vmatprep.subr.mxu0 0.0
    %1226 = vmatpush1.msra.mxu0 0.0
    %1227 = vmatprep.subr.mxu0 0.0
    %1228 = vmatpush1.msra.mxu0 0.0
    %1229 = vmatprep.subr.mxu0 0.0
    %1230 = vmatpush1.msra.mxu0 0.0
    %1231 = vmatprep.subr.mxu0 0.0
    %1232 = vmatpush1.msra.mxu0 0.0
    %1233 = vmatprep.subr.mxu0 0.0
    %1234 = vmatpush1.msra.mxu0 0.0
    %1235 = vmatprep.subr.mxu0 0.0
    %1236 = vmatpush1.msra.mxu0 0.0
    %1237 = vmatprep.subr.mxu0 0.0
    %1238 = vmatpush1.msra.mxu0 0.0
    %1239 = vmatprep.subr.mxu0 0.0
    %1240 = vmatpush1.msra.mxu0 0.0
    %1241 = vmatprep.subr.mxu0 0.0
    %1242 = vmatpush1.msra.mxu0 0.0
    %1243 = vmatprep.subr.mxu0 0.0
    %1244 = vmatpush1.msra.mxu0 0.0
    %1245 = vmatprep.subr.mxu0 0.0
    %1246 = vmatpush1.msra.mxu0 0.0
    %1247 = vmatprep.subr.mxu0 0.0
    %1248 = vmatpush1.msra.mxu0 0.0
    %1249 = vmatprep.subr.mxu0 0.0
    %1250 = vmatpush1.msra.mxu0 0.0
    %1251 = vmatprep.subr.mxu0 0.0
    %1252 = vmatpush1.msra.mxu0 0.0
    %1253 = vmatprep.subr.mxu0 0.0
    %1254 = vmatpush1.msra.mxu0 0.0
    %1255 = vmatprep.subr.mxu0 0.0
    %1256 = vmatpush1.msra.mxu0 0.0
    %1257 = vmatprep.subr.mxu0 0.0
    %1258 = vmatpush1.msra.mxu0 0.0
    %1259 = vmatprep.subr.mxu0 0.0
    %1260 = vmatpush1.msra.mxu0 0.0
    %1261 = vmatprep.subr.mxu0 0.0
    %1262 = vmatpush1.msra.mxu0 0.0
    %1263 = vmatprep.subr.mxu0 0.0
    %1264 = vmatpush1.msra.mxu0 0.0
    %1265 = vmatprep.subr.mxu0 0.0
    %1266 = vmatpush1.msra.mxu0 0.0
    %1267 = vmatprep.mubr.f32.mxu0 0.0
    %1268 = vmatmul.mubr.f32.gmra.mrb[0].mxu0 %v1106
    %v1269 = vpop.f32.mrb[0].mxu0
    %v1270 = vadd.f32 %v53, %v1269
    %v1271 = vpop.f32.mrb[0].mxu0
    %1272 = vdwg.mxu0
    %1274 = vrot.lane.b32.xlu0 %v1102, 32
    %v1275 = vpop.permute.xlu0 %1274
    %v1276 = vsel %vm199, %v1275, 0
    %1278 = vmatprep.subr.mxu0 0.0
    %1279 = vmatpush1.msra.mxu0 %v43
    %1280 = vmatprep.subr.mxu0 0.0
    %1281 = vmatpush1.msra.mxu0 %v44
    %1282 = vmatprep.subr.mxu0 0.0
    %1283 = vmatpush1.msra.mxu0 %v45
    %1284 = vmatprep.subr.mxu0 0.0
    %1285 = vmatpush1.msra.mxu0 %v46
    %1286 = vmatprep.subr.mxu0 0.0
    %1287 = vmatpush1.msra.mxu0 0.0
    %1288 = vmatprep.subr.mxu0 0.0
    %1289 = vmatpush1.msra.mxu0 0.0
    %1290 = vmatprep.subr.mxu0 0.0
    %1291 = vmatpush1.msra.mxu0 0.0
    %1292 = vmatprep.subr.mxu0 0.0
    %1293 = vmatpush1.msra.mxu0 0.0
    %1294 = vmatprep.subr.mxu0 0.0
    %1295 = vmatpush1.msra.mxu0 0.0
    %1296 = vmatprep.subr.mxu0 0.0
    %1297 = vmatpush1.msra.mxu0 0.0
    %1298 = vmatprep.subr.mxu0 0.0
    %1299 = vmatpush1.msra.mxu0 0.0
    %1300 = vmatprep.subr.mxu0 0.0
    %1301 = vmatpush1.msra.mxu0 0.0
    %1302 = vmatprep.subr.mxu0 0.0
    %1303 = vmatpush1.msra.mxu0 0.0
    %1304 = vmatprep.subr.mxu0 0.0
    %1305 = vmatpush1.msra.mxu0 0.0
    %1306 = vmatprep.subr.mxu0 0.0
    %1307 = vmatpush1.msra.mxu0 0.0
    %1308 = vmatprep.subr.mxu0 0.0
    %1309 = vmatpush1.msra.mxu0 0.0
    %1310 = vmatprep.subr.mxu0 0.0
    %1311 = vmatpush1.msra.mxu0 0.0
    %1312 = vmatprep.subr.mxu0 0.0
    %1313 = vmatpush1.msra.mxu0 0.0
    %1314 = vmatprep.subr.mxu0 0.0
    %1315 = vmatpush1.msra.mxu0 0.0
    %1316 = vmatprep.subr.mxu0 0.0
    %1317 = vmatpush1.msra.mxu0 0.0
    %1318 = vmatprep.subr.mxu0 0.0
    %1319 = vmatpush1.msra.mxu0 0.0
    %1320 = vmatprep.subr.mxu0 0.0
    %1321 = vmatpush1.msra.mxu0 0.0
    %1322 = vmatprep.subr.mxu0 0.0
    %1323 = vmatpush1.msra.mxu0 0.0
    %1324 = vmatprep.subr.mxu0 0.0
    %1325 = vmatpush1.msra.mxu0 0.0
    %1326 = vmatprep.subr.mxu0 0.0
    %1327 = vmatpush1.msra.mxu0 0.0
    %1328 = vmatprep.subr.mxu0 0.0
    %1329 = vmatpush1.msra.mxu0 0.0
    %1330 = vmatprep.subr.mxu0 0.0
    %1331 = vmatpush1.msra.mxu0 0.0
    %1332 = vmatprep.subr.mxu0 0.0
    %1333 = vmatpush1.msra.mxu0 0.0
    %1334 = vmatprep.subr.mxu0 0.0
    %1335 = vmatpush1.msra.mxu0 0.0
    %1336 = vmatprep.subr.mxu0 0.0
    %1337 = vmatpush1.msra.mxu0 0.0
    %1338 = vmatprep.subr.mxu0 0.0
    %1339 = vmatpush1.msra.mxu0 0.0
    %1340 = vmatprep.subr.mxu0 0.0
    %1341 = vmatpush1.msra.mxu0 0.0
    %1342 = vmatprep.mubr.f32.mxu0 0.0
    %1343 = vmatmul.mubr.f32.gmra.mrb[0].mxu0 %v1276
    %v1344 = vpop.f32.mrb[0].mxu0
    %v1345 = vadd.f32 0.0, %v1344
    %v1346 = vpop.f32.mrb[0].mxu0
    %1347 = vdwg.mxu0
    %v1348 = vadd.f32 %v1270, %v1345
    %v1349 = vxor.u32 %v1348, 2147483648
    %v1350 = vmul.f32 %v1349, 1.442695
    %v1351 = vpow.pop %v1350
    %v1352 = vadd.f32 %v1351, 1.0
    %v1353 = vrcp.pop %v1352
    %v1354 = vmul.f32 1.0, %v1353
    %v1355 = vtanh.pop %v1348
    %v1356 = vmul.f32 %v1354, %v1096
    %1358 = vrot.lane.b32.xlu0 %v1355, 64
    %v1359 = vpop.permute.xlu0 %1358
    %v1361 = vmul.f32 %v1354, %v1359
    %1363 = vrot.lane.b32.xlu0 %v1361, 32
    %v1364 = vpop.permute.xlu0 %1363
    %v1366 = vadd.f32 %v1356, %v1364
    %v1367 = vtanh.pop %v1366
    %1369 = vrot.lane.b32.xlu0 %v1367, 64
    %v1370 = vpop.permute.xlu0 %1369
    %v1372 = vmul.f32 %v1354, %v1370
    %1374 = vrot.lane.b32.xlu0 %v1202, 32
    %v1375 = vpop.permute.xlu0 %1374
    %v1376 = vsel %vm199, %v1375, 0
    %1378 = vmatprep.subr.mxu0 0.0
    %1379 = vmatpush1.msra.mxu0 %v39
    %1380 = vmatprep.subr.mxu0 0.0
    %1381 = vmatpush1.msra.mxu0 %v40
    %1382 = vmatprep.subr.mxu0 0.0
    %1383 = vmatpush1.msra.mxu0 %v41
    %1384 = vmatprep.subr.mxu0 0.0
    %1385 = vmatpush1.msra.mxu0 %v42
    %1386 = vmatprep.subr.mxu0 0.0
    %1387 = vmatpush1.msra.mxu0 0.0
    %1388 = vmatprep.subr.mxu0 0.0
    %1389 = vmatpush1.msra.mxu0 0.0
    %1390 = vmatprep.subr.mxu0 0.0
    %1391 = vmatpush1.msra.mxu0 0.0
    %1392 = vmatprep.subr.mxu0 0.0
    %1393 = vmatpush1.msra.mxu0 0.0
    %1394 = vmatprep.subr.mxu0 0.0
    %1395 = vmatpush1.msra.mxu0 0.0
    %1396 = vmatprep.subr.mxu0 0.0
    %1397 = vmatpush1.msra.mxu0 0.0
    %1398 = vmatprep.subr.mxu0 0.0
    %1399 = vmatpush1.msra.mxu0 0.0
    %1400 = vmatprep.subr.mxu0 0.0
    %1401 = vmatpush1.msra.mxu0 0.0
    %1402 = vmatprep.subr.mxu0 0.0
    %1403 = vmatpush1.msra.mxu0 0.0
    %1404 = vmatprep.subr.mxu0 0.0
    %1405 = vmatpush1.msra.mxu0 0.0
    %1406 = vmatprep.subr.mxu0 0.0
    %1407 = vmatpush1.msra.mxu0 0.0
    %1408 = vmatprep.subr.mxu0 0.0
    %1409 = vmatpush1.msra.mxu0 0.0
    %1410 = vmatprep.subr.mxu0 0.0
    %1411 = vmatpush1.msra.mxu0 0.0
    %1412 = vmatprep.subr.mxu0 0.0
    %1413 = vmatpush1.msra.mxu0 0.0
    %1414 = vmatprep.subr.mxu0 0.0
    %1415 = vmatpush1.msra.mxu0 0.0
    %1416 = vmatprep.subr.mxu0 0.0
    %1417 = vmatpush1.msra.mxu0 0.0
    %1418 = vmatprep.subr.mxu0 0.0
    %1419 = vmatpush1.msra.mxu0 0.0
    %1420 = vmatprep.subr.mxu0 0.0
    %1421 = vmatpush1.msra.mxu0 0.0
    %1422 = vmatprep.subr.mxu0 0.0
    %1423 = vmatpush1.msra.mxu0 0.0
    %1424 = vmatprep.subr.mxu0 0.0
    %1425 = vmatpush1.msra.mxu0 0.0
    %1426 = vmatprep.subr.mxu0 0.0
    %1427 = vmatpush1.msra.mxu0 0.0
    %1428 = vmatprep.subr.mxu0 0.0
    %1429 = vmatpush1.msra.mxu0 0.0
    %1430 = vmatprep.subr.mxu0 0.0
    %1431 = vmatpush1.msra.mxu0 0.0
    %1432 = vmatprep.subr.mxu0 0.0
    %1433 = vmatpush1.msra.mxu0 0.0
    %1434 = vmatprep.subr.mxu0 0.0
    %1435 = vmatpush1.msra.mxu0 0.0
    %1436 = vmatprep.subr.mxu0 0.0
    %1437 = vmatpush1.msra.mxu0 0.0
    %1438 = vmatprep.subr.mxu0 0.0
    %1439 = vmatpush1.msra.mxu0 0.0
    %1440 = vmatprep.subr.mxu0 0.0
    %1441 = vmatpush1.msra.mxu0 0.0
    %1442 = vmatprep.mubr.f32.mxu0 0.0
    %1443 = vmatmul.mubr.f32.gmra.mrb[0].mxu0 %v1376
    %v1444 = vpop.f32.mrb[0].mxu0
    %v1445 = vadd.f32 0.0, %v1444
    %v1446 = vpop.f32.mrb[0].mxu0
    %1447 = vdwg.mxu0
    %v1448 = vadd.f32 %v186, %v1445
    %v1449 = vxor.u32 %v1448, 2147483648
    %v1450 = vmul.f32 %v1449, 1.442695
    %v1451 = vpow.pop %v1450
    %v1452 = vadd.f32 %v1451, 1.0
    %v1453 = vrcp.pop %v1452
    %v1454 = vmul.f32 1.0, %v1453
    %v1455 = vtanh.pop %v1448
    %v1456 = vmul.f32 %v1454, %v1196
    %1458 = vrot.lane.b32.xlu0 %v1455, 64
    %v1459 = vpop.permute.xlu0 %1458
    %v1461 = vmul.f32 %v1454, %v1459
    %1463 = vrot.lane.b32.xlu0 %v1461, 32
    %v1464 = vpop.permute.xlu0 %1463
    %v1466 = vadd.f32 %v1456, %v1464
    %v1467 = vtanh.pop %v1466
    %1469 = vrot.lane.b32.xlu0 %v1467, 64
    %v1470 = vpop.permute.xlu0 %1469
    %v1472 = vmul.f32 %v1454, %v1470
    %1473 = vmatprep.subr.mxu0 0.0
    %1474 = vmatpush1.msra.mxu0 %v35
    %1475 = vmatprep.subr.mxu0 0.0
    %1476 = vmatpush1.msra.mxu0 %v36
    %1477 = vmatprep.subr.mxu0 0.0
    %1478 = vmatpush1.msra.mxu0 %v37
    %1479 = vmatprep.subr.mxu0 0.0
    %1480 = vmatpush1.msra.mxu0 %v38
    %1481 = vmatprep.subr.mxu0 0.0
    %1482 = vmatpush1.msra.mxu0 0.0
    %1483 = vmatprep.subr.mxu0 0.0
    %1484 = vmatpush1.msra.mxu0 0.0
    %1485 = vmatprep.subr.mxu0 0.0
    %1486 = vmatpush1.msra.mxu0 0.0
    %1487 = vmatprep.subr.mxu0 0.0
    %1488 = vmatpush1.msra.mxu0 0.0
    %1489 = vmatprep.subr.mxu0 0.0
    %1490 = vmatpush1.msra.mxu0 0.0
    %1491 = vmatprep.subr.mxu0 0.0
    %1492 = vmatpush1.msra.mxu0 0.0
    %1493 = vmatprep.subr.mxu0 0.0
    %1494 = vmatpush1.msra.mxu0 0.0
    %1495 = vmatprep.subr.mxu0 0.0
    %1496 = vmatpush1.msra.mxu0 0.0
    %1497 = vmatprep.subr.mxu0 0.0
    %1498 = vmatpush1.msra.mxu0 0.0
    %1499 = vmatprep.subr.mxu0 0.0
    %1500 = vmatpush1.msra.mxu0 0.0
    %1501 = vmatprep.subr.mxu0 0.0
    %1502 = vmatpush1.msra.mxu0 0.0
    %1503 = vmatprep.subr.mxu0 0.0
    %1504 = vmatpush1.msra.mxu0 0.0
    %1505 = vmatprep.subr.mxu0 0.0
    %1506 = vmatpush1.msra.mxu0 0.0
    %1507 = vmatprep.subr.mxu0 0.0
    %1508 = vmatpush1.msra.mxu0 0.0
    %1509 = vmatprep.subr.mxu0 0.0
    %1510 = vmatpush1.msra.mxu0 0.0
    %1511 = vmatprep.subr.mxu0 0.0
    %1512 = vmatpush1.msra.mxu0 0.0
    %1513 = vmatprep.subr.mxu0 0.0
    %1514 = vmatpush1.msra.mxu0 0.0
    %1515 = vmatprep.subr.mxu0 0.0
    %1516 = vmatpush1.msra.mxu0 0.0
    %1517 = vmatprep.subr.mxu0 0.0
    %1518 = vmatpush1.msra.mxu0 0.0
    %1519 = vmatprep.subr.mxu0 0.0
    %1520 = vmatpush1.msra.mxu0 0.0
    %1521 = vmatprep.subr.mxu0 0.0
    %1522 = vmatpush1.msra.mxu0 0.0
    %1523 = vmatprep.subr.mxu0 0.0
    %1524 = vmatpush1.msra.mxu0 0.0
    %1525 = vmatprep.subr.mxu0 0.0
    %1526 = vmatpush1.msra.mxu0 0.0
    %1527 = vmatprep.subr.mxu0 0.0
    %1528 = vmatpush1.msra.mxu0 0.0
    %1529 = vmatprep.subr.mxu0 0.0
    %1530 = vmatpush1.msra.mxu0 0.0
    %1531 = vmatprep.subr.mxu0 0.0
    %1532 = vmatpush1.msra.mxu0 0.0
    %1533 = vmatprep.subr.mxu0 0.0
    %1534 = vmatpush1.msra.mxu0 0.0
    %1535 = vmatprep.subr.mxu0 0.0
    %1536 = vmatpush1.msra.mxu0 0.0
    %1537 = vmatprep.mubr.f32.mxu0 0.0
    %1538 = vmatmul.mubr.f32.gmra.mrb[0].mxu0 %v1376
    %v1539 = vpop.f32.mrb[0].mxu0
    %v1540 = vadd.f32 %v53, %v1539
    %v1541 = vpop.f32.mrb[0].mxu0
    %1542 = vdwg.mxu0
    %1544 = vrot.lane.b32.xlu0 %v1372, 32
    %v1545 = vpop.permute.xlu0 %1544
    %v1546 = vsel %vm199, %v1545, 0
    %1548 = vmatprep.subr.mxu0 0.0
    %1549 = vmatpush1.msra.mxu0 %v43
    %1550 = vmatprep.subr.mxu0 0.0
    %1551 = vmatpush1.msra.mxu0 %v44
    %1552 = vmatprep.subr.mxu0 0.0
    %1553 = vmatpush1.msra.mxu0 %v45
    %1554 = vmatprep.subr.mxu0 0.0
    %1555 = vmatpush1.msra.mxu0 %v46
    %1556 = vmatprep.subr.mxu0 0.0
    %1557 = vmatpush1.msra.mxu0 0.0
    %1558 = vmatprep.subr.mxu0 0.0
    %1559 = vmatpush1.msra.mxu0 0.0
    %1560 = vmatprep.subr.mxu0 0.0
    %1561 = vmatpush1.msra.mxu0 0.0
    %1562 = vmatprep.subr.mxu0 0.0
    %1563 = vmatpush1.msra.mxu0 0.0
    %1564 = vmatprep.subr.mxu0 0.0
    %1565 = vmatpush1.msra.mxu0 0.0
    %1566 = vmatprep.subr.mxu0 0.0
    %1567 = vmatpush1.msra.mxu0 0.0
    %1568 = vmatprep.subr.mxu0 0.0
    %1569 = vmatpush1.msra.mxu0 0.0
    %1570 = vmatprep.subr.mxu0 0.0
    %1571 = vmatpush1.msra.mxu0 0.0
    %1572 = vmatprep.subr.mxu0 0.0
    %1573 = vmatpush1.msra.mxu0 0.0
    %1574 = vmatprep.subr.mxu0 0.0
    %1575 = vmatpush1.msra.mxu0 0.0
    %1576 = vmatprep.subr.mxu0 0.0
    %1577 = vmatpush1.msra.mxu0 0.0
    %1578 = vmatprep.subr.mxu0 0.0
    %1579 = vmatpush1.msra.mxu0 0.0
    %1580 = vmatprep.subr.mxu0 0.0
    %1581 = vmatpush1.msra.mxu0 0.0
    %1582 = vmatprep.subr.mxu0 0.0
    %1583 = vmatpush1.msra.mxu0 0.0
    %1584 = vmatprep.subr.mxu0 0.0
    %1585 = vmatpush1.msra.mxu0 0.0
    %1586 = vmatprep.subr.mxu0 0.0
    %1587 = vmatpush1.msra.mxu0 0.0
    %1588 = vmatprep.subr.mxu0 0.0
    %1589 = vmatpush1.msra.mxu0 0.0
    %1590 = vmatprep.subr.mxu0 0.0
    %1591 = vmatpush1.msra.mxu0 0.0
    %1592 = vmatprep.subr.mxu0 0.0
    %1593 = vmatpush1.msra.mxu0 0.0
    %1594 = vmatprep.subr.mxu0 0.0
    %1595 = vmatpush1.msra.mxu0 0.0
    %1596 = vmatprep.subr.mxu0 0.0
    %1597 = vmatpush1.msra.mxu0 0.0
    %1598 = vmatprep.subr.mxu0 0.0
    %1599 = vmatpush1.msra.mxu0 0.0
    %1600 = vmatprep.subr.mxu0 0.0
    %1601 = vmatpush1.msra.mxu0 0.0
    %1602 = vmatprep.subr.mxu0 0.0
    %1603 = vmatpush1.msra.mxu0 0.0
    %1604 = vmatprep.subr.mxu0 0.0
    %1605 = vmatpush1.msra.mxu0 0.0
    %1606 = vmatprep.subr.mxu0 0.0
    %1607 = vmatpush1.msra.mxu0 0.0
    %1608 = vmatprep.subr.mxu0 0.0
    %1609 = vmatpush1.msra.mxu0 0.0
    %1610 = vmatprep.subr.mxu0 0.0
    %1611 = vmatpush1.msra.mxu0 0.0
    %1612 = vmatprep.mubr.f32.mxu0 0.0
    %1613 = vmatmul.mubr.f32.gmra.mrb[0].mxu0 %v1546
    %v1614 = vpop.f32.mrb[0].mxu0
    %v1615 = vadd.f32 0.0, %v1614
    %v1616 = vpop.f32.mrb[0].mxu0
    %1617 = vdwg.mxu0
    %v1618 = vadd.f32 %v1540, %v1615
    %v1619 = vxor.u32 %v1618, 2147483648
    %v1620 = vmul.f32 %v1619, 1.442695
    %v1621 = vpow.pop %v1620
    %v1622 = vadd.f32 %v1621, 1.0
    %v1623 = vrcp.pop %v1622
    %v1624 = vmul.f32 1.0, %v1623
    %v1625 = vtanh.pop %v1618
    %v1626 = vmul.f32 %v1624, %v1366
    %1628 = vrot.lane.b32.xlu0 %v1625, 64
    %v1629 = vpop.permute.xlu0 %1628
    %v1631 = vmul.f32 %v1624, %v1629
    %1633 = vrot.lane.b32.xlu0 %v1631, 32
    %v1634 = vpop.permute.xlu0 %1633
    %v1636 = vadd.f32 %v1626, %v1634
    %v1637 = vtanh.pop %v1636
    %1639 = vrot.lane.b32.xlu0 %v1637, 64
    %v1640 = vpop.permute.xlu0 %1639
    %v1642 = vmul.f32 %v1624, %v1640
    %1644 = vrot.lane.b32.xlu0 %v1472, 32
    %v1645 = vpop.permute.xlu0 %1644
    %v1646 = vsel %vm199, %v1645, 0
    %1648 = vmatprep.subr.mxu0 0.0
    %1649 = vmatpush1.msra.mxu0 %v39
    %1650 = vmatprep.subr.mxu0 0.0
    %1651 = vmatpush1.msra.mxu0 %v40
    %1652 = vmatprep.subr.mxu0 0.0
    %1653 = vmatpush1.msra.mxu0 %v41
    %1654 = vmatprep.subr.mxu0 0.0
    %1655 = vmatpush1.msra.mxu0 %v42
    %1656 = vmatprep.subr.mxu0 0.0
    %1657 = vmatpush1.msra.mxu0 0.0
    %1658 = vmatprep.subr.mxu0 0.0
    %1659 = vmatpush1.msra.mxu0 0.0
    %1660 = vmatprep.subr.mxu0 0.0
    %1661 = vmatpush1.msra.mxu0 0.0
    %1662 = vmatprep.subr.mxu0 0.0
    %1663 = vmatpush1.msra.mxu0 0.0
    %1664 = vmatprep.subr.mxu0 0.0
    %1665 = vmatpush1.msra.mxu0 0.0
    %1666 = vmatprep.subr.mxu0 0.0
    %1667 = vmatpush1.msra.mxu0 0.0
    %1668 = vmatprep.subr.mxu0 0.0
    %1669 = vmatpush1.msra.mxu0 0.0
    %1670 = vmatprep.subr.mxu0 0.0
    %1671 = vmatpush1.msra.mxu0 0.0
    %1672 = vmatprep.subr.mxu0 0.0
    %1673 = vmatpush1.msra.mxu0 0.0
    %1674 = vmatprep.subr.mxu0 0.0
    %1675 = vmatpush1.msra.mxu0 0.0
    %1676 = vmatprep.subr.mxu0 0.0
    %1677 = vmatpush1.msra.mxu0 0.0
    %1678 = vmatprep.subr.mxu0 0.0
    %1679 = vmatpush1.msra.mxu0 0.0
    %1680 = vmatprep.subr.mxu0 0.0
    %1681 = vmatpush1.msra.mxu0 0.0
    %1682 = vmatprep.subr.mxu0 0.0
    %1683 = vmatpush1.msra.mxu0 0.0
    %1684 = vmatprep.subr.mxu0 0.0
    %1685 = vmatpush1.msra.mxu0 0.0
    %1686 = vmatprep.subr.mxu0 0.0
    %1687 = vmatpush1.msra.mxu0 0.0
    %1688 = vmatprep.subr.mxu0 0.0
    %1689 = vmatpush1.msra.mxu0 0.0
    %1690 = vmatprep.subr.mxu0 0.0
    %1691 = vmatpush1.msra.mxu0 0.0
    %1692 = vmatprep.subr.mxu0 0.0
    %1693 = vmatpush1.msra.mxu0 0.0
    %1694 = vmatprep.subr.mxu0 0.0
    %1695 = vmatpush1.msra.mxu0 0.0
    %1696 = vmatprep.subr.mxu0 0.0
    %1697 = vmatpush1.msra.mxu0 0.0
    %1698 = vmatprep.subr.mxu0 0.0
    %1699 = vmatpush1.msra.mxu0 0.0
    %1700 = vmatprep.subr.mxu0 0.0
    %1701 = vmatpush1.msra.mxu0 0.0
    %1702 = vmatprep.subr.mxu0 0.0
    %1703 = vmatpush1.msra.mxu0 0.0
    %1704 = vmatprep.subr.mxu0 0.0
    %1705 = vmatpush1.msra.mxu0 0.0
    %1706 = vmatprep.subr.mxu0 0.0
    %1707 = vmatpush1.msra.mxu0 0.0
    %1708 = vmatprep.subr.mxu0 0.0
    %1709 = vmatpush1.msra.mxu0 0.0
    %1710 = vmatprep.subr.mxu0 0.0
    %1711 = vmatpush1.msra.mxu0 0.0
    %1712 = vmatprep.mubr.f32.mxu0 0.0
    %1713 = vmatmul.mubr.f32.gmra.mrb[0].mxu0 %v1646
    %v1714 = vpop.f32.mrb[0].mxu0
    %v1715 = vadd.f32 0.0, %v1714
    %v1716 = vpop.f32.mrb[0].mxu0
    %1717 = vdwg.mxu0
    %v1718 = vadd.f32 %v191, %v1715
    %v1719 = vxor.u32 %v1718, 2147483648
    %v1720 = vmul.f32 %v1719, 1.442695
    %v1721 = vpow.pop %v1720
    %v1722 = vadd.f32 %v1721, 1.0
    %v1723 = vrcp.pop %v1722
    %v1724 = vmul.f32 1.0, %v1723
    %v1725 = vtanh.pop %v1718
    %v1726 = vmul.f32 %v1724, %v1466
    %1728 = vrot.lane.b32.xlu0 %v1725, 64
    %v1729 = vpop.permute.xlu0 %1728
    %v1731 = vmul.f32 %v1724, %v1729
    %1733 = vrot.lane.b32.xlu0 %v1731, 32
    %v1734 = vpop.permute.xlu0 %1733
    %v1736 = vadd.f32 %v1726, %v1734
    %v1737 = vtanh.pop %v1736
    %1739 = vrot.lane.b32.xlu0 %v1737, 64
    %v1740 = vpop.permute.xlu0 %1739
    %v1742 = vmul.f32 %v1724, %v1740
    %1743 = vmatprep.subr.mxu0 0.0
    %1744 = vmatpush1.msra.mxu0 %v35
    %1745 = vmatprep.subr.mxu0 0.0
    %1746 = vmatpush1.msra.mxu0 %v36
    %1747 = vmatprep.subr.mxu0 0.0
    %1748 = vmatpush1.msra.mxu0 %v37
    %1749 = vmatprep.subr.mxu0 0.0
    %1750 = vmatpush1.msra.mxu0 %v38
    %1751 = vmatprep.subr.mxu0 0.0
    %1752 = vmatpush1.msra.mxu0 0.0
    %1753 = vmatprep.subr.mxu0 0.0
    %1754 = vmatpush1.msra.mxu0 0.0
    %1755 = vmatprep.subr.mxu0 0.0
    %1756 = vmatpush1.msra.mxu0 0.0
    %1757 = vmatprep.subr.mxu0 0.0
    %1758 = vmatpush1.msra.mxu0 0.0
    %1759 = vmatprep.subr.mxu0 0.0
    %1760 = vmatpush1.msra.mxu0 0.0
    %1761 = vmatprep.subr.mxu0 0.0
    %1762 = vmatpush1.msra.mxu0 0.0
    %1763 = vmatprep.subr.mxu0 0.0
    %1764 = vmatpush1.msra.mxu0 0.0
    %1765 = vmatprep.subr.mxu0 0.0
    %1766 = vmatpush1.msra.mxu0 0.0
    %1767 = vmatprep.subr.mxu0 0.0
    %1768 = vmatpush1.msra.mxu0 0.0
    %1769 = vmatprep.subr.mxu0 0.0
    %1770 = vmatpush1.msra.mxu0 0.0
    %1771 = vmatprep.subr.mxu0 0.0
    %1772 = vmatpush1.msra.mxu0 0.0
    %1773 = vmatprep.subr.mxu0 0.0
    %1774 = vmatpush1.msra.mxu0 0.0
    %1775 = vmatprep.subr.mxu0 0.0
    %1776 = vmatpush1.msra.mxu0 0.0
    %1777 = vmatprep.subr.mxu0 0.0
    %1778 = vmatpush1.msra.mxu0 0.0
    %1779 = vmatprep.subr.mxu0 0.0
    %1780 = vmatpush1.msra.mxu0 0.0
    %1781 = vmatprep.subr.mxu0 0.0
    %1782 = vmatpush1.msra.mxu0 0.0
    %1783 = vmatprep.subr.mxu0 0.0
    %1784 = vmatpush1.msra.mxu0 0.0
    %1785 = vmatprep.subr.mxu0 0.0
    %1786 = vmatpush1.msra.mxu0 0.0
    %1787 = vmatprep.subr.mxu0 0.0
    %1788 = vmatpush1.msra.mxu0 0.0
    %1789 = vmatprep.subr.mxu0 0.0
    %1790 = vmatpush1.msra.mxu0 0.0
    %1791 = vmatprep.subr.mxu0 0.0
    %1792 = vmatpush1.msra.mxu0 0.0
    %1793 = vmatprep.subr.mxu0 0.0
    %1794 = vmatpush1.msra.mxu0 0.0
    %1795 = vmatprep.subr.mxu0 0.0
    %1796 = vmatpush1.msra.mxu0 0.0
    %1797 = vmatprep.subr.mxu0 0.0
    %1798 = vmatpush1.msra.mxu0 0.0
    %1799 = vmatprep.subr.mxu0 0.0
    %1800 = vmatpush1.msra.mxu0 0.0
    %1801 = vmatprep.subr.mxu0 0.0
    %1802 = vmatpush1.msra.mxu0 0.0
    %1803 = vmatprep.subr.mxu0 0.0
    %1804 = vmatpush1.msra.mxu0 0.0
    %1805 = vmatprep.subr.mxu0 0.0
    %1806 = vmatpush1.msra.mxu0 0.0
    %1807 = vmatprep.mubr.f32.mxu0 0.0
    %1808 = vmatmul.mubr.f32.gmra.mrb[0].mxu0 %v1646
    %v1809 = vpop.f32.mrb[0].mxu0
    %v1810 = vadd.f32 %v53, %v1809
    %v1811 = vpop.f32.mrb[0].mxu0
    %1812 = vdwg.mxu0
    %1814 = vrot.lane.b32.xlu0 %v1642, 32
    %v1815 = vpop.permute.xlu0 %1814
    %v1816 = vsel %vm199, %v1815, 0
    %1818 = vmatprep.subr.mxu0 0.0
    %1819 = vmatpush1.msra.mxu0 %v43
    %1820 = vmatprep.subr.mxu0 0.0
    %1821 = vmatpush1.msra.mxu0 %v44
    %1822 = vmatprep.subr.mxu0 0.0
    %1823 = vmatpush1.msra.mxu0 %v45
    %1824 = vmatprep.subr.mxu0 0.0
    %1825 = vmatpush1.msra.mxu0 %v46
    %1826 = vmatprep.subr.mxu0 0.0
    %1827 = vmatpush1.msra.mxu0 0.0
    %1828 = vmatprep.subr.mxu0 0.0
    %1829 = vmatpush1.msra.mxu0 0.0
    %1830 = vmatprep.subr.mxu0 0.0
    %1831 = vmatpush1.msra.mxu0 0.0
    %1832 = vmatprep.subr.mxu0 0.0
    %1833 = vmatpush1.msra.mxu0 0.0
    %1834 = vmatprep.subr.mxu0 0.0
    %1835 = vmatpush1.msra.mxu0 0.0
    %1836 = vmatprep.subr.mxu0 0.0
    %1837 = vmatpush1.msra.mxu0 0.0
    %1838 = vmatprep.subr.mxu0 0.0
    %1839 = vmatpush1.msra.mxu0 0.0
    %1840 = vmatprep.subr.mxu0 0.0
    %1841 = vmatpush1.msra.mxu0 0.0
    %1842 = vmatprep.subr.mxu0 0.0
    %1843 = vmatpush1.msra.mxu0 0.0
    %1844 = vmatprep.subr.mxu0 0.0
    %1845 = vmatpush1.msra.mxu0 0.0
    %1846 = vmatprep.subr.mxu0 0.0
    %1847 = vmatpush1.msra.mxu0 0.0
    %1848 = vmatprep.subr.mxu0 0.0
    %1849 = vmatpush1.msra.mxu0 0.0
    %1850 = vmatprep.subr.mxu0 0.0
    %1851 = vmatpush1.msra.mxu0 0.0
    %1852 = vmatprep.subr.mxu0 0.0
    %1853 = vmatpush1.msra.mxu0 0.0
    %1854 = vmatprep.subr.mxu0 0.0
    %1855 = vmatpush1.msra.mxu0 0.0
    %1856 = vmatprep.subr.mxu0 0.0
    %1857 = vmatpush1.msra.mxu0 0.0
    %1858 = vmatprep.subr.mxu0 0.0
    %1859 = vmatpush1.msra.mxu0 0.0
    %1860 = vmatprep.subr.mxu0 0.0
    %1861 = vmatpush1.msra.mxu0 0.0
    %1862 = vmatprep.subr.mxu0 0.0
    %1863 = vmatpush1.msra.mxu0 0.0
    %1864 = vmatprep.subr.mxu0 0.0
    %1865 = vmatpush1.msra.mxu0 0.0
    %1866 = vmatprep.subr.mxu0 0.0
    %1867 = vmatpush1.msra.mxu0 0.0
    %1868 = vmatprep.subr.mxu0 0.0
    %1869 = vmatpush1.msra.mxu0 0.0
    %1870 = vmatprep.subr.mxu0 0.0
    %1871 = vmatpush1.msra.mxu0 0.0
    %1872 = vmatprep.subr.mxu0 0.0
    %1873 = vmatpush1.msra.mxu0 0.0
    %1874 = vmatprep.subr.mxu0 0.0
    %1875 = vmatpush1.msra.mxu0 0.0
    %1876 = vmatprep.subr.mxu0 0.0
    %1877 = vmatpush1.msra.mxu0 0.0
    %1878 = vmatprep.subr.mxu0 0.0
    %1879 = vmatpush1.msra.mxu0 0.0
    %1880 = vmatprep.subr.mxu0 0.0
    %1881 = vmatpush1.msra.mxu0 0.0
    %1882 = vmatprep.mubr.f32.mxu0 0.0
    %1883 = vmatmul.mubr.f32.gmra.mrb[0].mxu0 %v1816
    %v1884 = vpop.f32.mrb[0].mxu0
    %v1885 = vadd.f32 0.0, %v1884
    %v1886 = vpop.f32.mrb[0].mxu0
    %1887 = vdwg.mxu0
    %v1888 = vadd.f32 %v1810, %v1885
    %v1889 = vxor.u32 %v1888, 2147483648
    %v1890 = vmul.f32 %v1889, 1.442695
    %v1891 = vpow.pop %v1890
    %v1892 = vadd.f32 %v1891, 1.0
    %v1893 = vrcp.pop %v1892
    %v1894 = vmul.f32 1.0, %v1893
    %v1895 = vtanh.pop %v1888
    %v1896 = vmul.f32 %v1894, %v1636
    %1898 = vrot.lane.b32.xlu0 %v1895, 64
    %v1899 = vpop.permute.xlu0 %1898
    %v1901 = vmul.f32 %v1894, %v1899
    %1903 = vrot.lane.b32.xlu0 %v1901, 32
    %v1904 = vpop.permute.xlu0 %1903
    %v1906 = vadd.f32 %v1896, %v1904
    %v1907 = vtanh.pop %v1906
    %1909 = vrot.lane.b32.xlu0 %v1907, 64
    %v1910 = vpop.permute.xlu0 %1909
    %v1912 = vmul.f32 %v1894, %v1910
    %1914 = vrot.lane.b32.xlu0 %v1742, 32
    %v1915 = vpop.permute.xlu0 %1914
    %v1916 = vsel %vm199, %v1915, 0
    %1918 = vmatprep.subr.mxu0 0.0
    %1919 = vmatpush1.msra.mxu0 %v39
    %1920 = vmatprep.subr.mxu0 0.0
    %1921 = vmatpush1.msra.mxu0 %v40
    %1922 = vmatprep.subr.mxu0 0.0
    %1923 = vmatpush1.msra.mxu0 %v41
    %1924 = vmatprep.subr.mxu0 0.0
    %1925 = vmatpush1.msra.mxu0 %v42
    %1926 = vmatprep.subr.mxu0 0.0
    %1927 = vmatpush1.msra.mxu0 0.0
    %1928 = vmatprep.subr.mxu0 0.0
    %1929 = vmatpush1.msra.mxu0 0.0
    %1930 = vmatprep.subr.mxu0 0.0
    %1931 = vmatpush1.msra.mxu0 0.0
    %1932 = vmatprep.subr.mxu0 0.0
    %1933 = vmatpush1.msra.mxu0 0.0
    %1934 = vmatprep.subr.mxu0 0.0
    %1935 = vmatpush1.msra.mxu0 0.0
    %1936 = vmatprep.subr.mxu0 0.0
    %1937 = vmatpush1.msra.mxu0 0.0
    %1938 = vmatprep.subr.mxu0 0.0
    %1939 = vmatpush1.msra.mxu0 0.0
    %1940 = vmatprep.subr.mxu0 0.0
    %1941 = vmatpush1.msra.mxu0 0.0
    %1942 = vmatprep.subr.mxu0 0.0
    %1943 = vmatpush1.msra.mxu0 0.0
    %1944 = vmatprep.subr.mxu0 0.0
    %1945 = vmatpush1.msra.mxu0 0.0
    %1946 = vmatprep.subr.mxu0 0.0
    %1947 = vmatpush1.msra.mxu0 0.0
    %1948 = vmatprep.subr.mxu0 0.0
    %1949 = vmatpush1.msra.mxu0 0.0
    %1950 = vmatprep.subr.mxu0 0.0
    %1951 = vmatpush1.msra.mxu0 0.0
    %1952 = vmatprep.subr.mxu0 0.0
    %1953 = vmatpush1.msra.mxu0 0.0
    %1954 = vmatprep.subr.mxu0 0.0
    %1955 = vmatpush1.msra.mxu0 0.0
    %1956 = vmatprep.subr.mxu0 0.0
    %1957 = vmatpush1.msra.mxu0 0.0
    %1958 = vmatprep.subr.mxu0 0.0
    %1959 = vmatpush1.msra.mxu0 0.0
    %1960 = vmatprep.subr.mxu0 0.0
    %1961 = vmatpush1.msra.mxu0 0.0
    %1962 = vmatprep.subr.mxu0 0.0
    %1963 = vmatpush1.msra.mxu0 0.0
    %1964 = vmatprep.subr.mxu0 0.0
    %1965 = vmatpush1.msra.mxu0 0.0
    %1966 = vmatprep.subr.mxu0 0.0
    %1967 = vmatpush1.msra.mxu0 0.0
    %1968 = vmatprep.subr.mxu0 0.0
    %1969 = vmatpush1.msra.mxu0 0.0
    %1970 = vmatprep.subr.mxu0 0.0
    %1971 = vmatpush1.msra.mxu0 0.0
    %1972 = vmatprep.subr.mxu0 0.0
    %1973 = vmatpush1.msra.mxu0 0.0
    %1974 = vmatprep.subr.mxu0 0.0
    %1975 = vmatpush1.msra.mxu0 0.0
    %1976 = vmatprep.subr.mxu0 0.0
    %1977 = vmatpush1.msra.mxu0 0.0
    %1978 = vmatprep.subr.mxu0 0.0
    %1979 = vmatpush1.msra.mxu0 0.0
    %1980 = vmatprep.subr.mxu0 0.0
    %1981 = vmatpush1.msra.mxu0 0.0
    %1982 = vmatprep.mubr.f32.mxu0 0.0
    %1983 = vmatmul.mubr.f32.gmra.mrb[0].mxu0 %v1916
    %v1984 = vpop.f32.mrb[0].mxu0
    %v1985 = vadd.f32 0.0, %v1984
    %v1986 = vpop.f32.mrb[0].mxu0
    %1987 = vdwg.mxu0
    %v1988 = vadd.f32 %v196, %v1985
    %v1989 = vxor.u32 %v1988, 2147483648
    %v1990 = vmul.f32 %v1989, 1.442695
    %v1991 = vpow.pop %v1990
    %v1992 = vadd.f32 %v1991, 1.0
    %v1993 = vrcp.pop %v1992
    %v1994 = vmul.f32 1.0, %v1993
    %v1995 = vtanh.pop %v1988
    %v1996 = vmul.f32 %v1994, %v1736
    %1998 = vrot.lane.b32.xlu0 %v1995, 64
    %v1999 = vpop.permute.xlu0 %1998
    %v2001 = vmul.f32 %v1994, %v1999
    %2003 = vrot.lane.b32.xlu0 %v2001, 32
    %v2004 = vpop.permute.xlu0 %2003
    %v2006 = vadd.f32 %v1996, %v2004
    %v2007 = vtanh.pop %v2006
    %2009 = vrot.lane.b32.xlu0 %v2007, 64
    %v2010 = vpop.permute.xlu0 %2009
    %v2012 = vmul.f32 %v1994, %v2010
    %2013 = vmatprep.subr.mxu0 0.0
    %2014 = vmatpush1.msra.mxu0 %v35
    %2015 = vmatprep.subr.mxu0 0.0
    %2016 = vmatpush1.msra.mxu0 %v36
    %2017 = vmatprep.subr.mxu0 0.0
    %2018 = vmatpush1.msra.mxu0 %v37
    %2019 = vmatprep.subr.mxu0 0.0
    %2020 = vmatpush1.msra.mxu0 %v38
    %2021 = vmatprep.subr.mxu0 0.0
    %2022 = vmatpush1.msra.mxu0 0.0
    %2023 = vmatprep.subr.mxu0 0.0
    %2024 = vmatpush1.msra.mxu0 0.0
    %2025 = vmatprep.subr.mxu0 0.0
    %2026 = vmatpush1.msra.mxu0 0.0
    %2027 = vmatprep.subr.mxu0 0.0
    %2028 = vmatpush1.msra.mxu0 0.0
    %2029 = vmatprep.subr.mxu0 0.0
    %2030 = vmatpush1.msra.mxu0 0.0
    %2031 = vmatprep.subr.mxu0 0.0
    %2032 = vmatpush1.msra.mxu0 0.0
    %2033 = vmatprep.subr.mxu0 0.0
    %2034 = vmatpush1.msra.mxu0 0.0
    %2035 = vmatprep.subr.mxu0 0.0
    %2036 = vmatpush1.msra.mxu0 0.0
    %2037 = vmatprep.subr.mxu0 0.0
    %2038 = vmatpush1.msra.mxu0 0.0
    %2039 = vmatprep.subr.mxu0 0.0
    %2040 = vmatpush1.msra.mxu0 0.0
    %2041 = vmatprep.subr.mxu0 0.0
    %2042 = vmatpush1.msra.mxu0 0.0
    %2043 = vmatprep.subr.mxu0 0.0
    %2044 = vmatpush1.msra.mxu0 0.0
    %2045 = vmatprep.subr.mxu0 0.0
    %2046 = vmatpush1.msra.mxu0 0.0
    %2047 = vmatprep.subr.mxu0 0.0
    %2048 = vmatpush1.msra.mxu0 0.0
    %2049 = vmatprep.subr.mxu0 0.0
    %2050 = vmatpush1.msra.mxu0 0.0
    %2051 = vmatprep.subr.mxu0 0.0
    %2052 = vmatpush1.msra.mxu0 0.0
    %2053 = vmatprep.subr.mxu0 0.0
    %2054 = vmatpush1.msra.mxu0 0.0
    %2055 = vmatprep.subr.mxu0 0.0
    %2056 = vmatpush1.msra.mxu0 0.0
    %2057 = vmatprep.subr.mxu0 0.0
    %2058 = vmatpush1.msra.mxu0 0.0
    %2059 = vmatprep.subr.mxu0 0.0
    %2060 = vmatpush1.msra.mxu0 0.0
    %2061 = vmatprep.subr.mxu0 0.0
    %2062 = vmatpush1.msra.mxu0 0.0
    %2063 = vmatprep.subr.mxu0 0.0
    %2064 = vmatpush1.msra.mxu0 0.0
    %2065 = vmatprep.subr.mxu0 0.0
    %2066 = vmatpush1.msra.mxu0 0.0
    %2067 = vmatprep.subr.mxu0 0.0
    %2068 = vmatpush1.msra.mxu0 0.0
    %2069 = vmatprep.subr.mxu0 0.0
    %2070 = vmatpush1.msra.mxu0 0.0
    %2071 = vmatprep.subr.mxu0 0.0
    %2072 = vmatpush1.msra.mxu0 0.0
    %2073 = vmatprep.subr.mxu0 0.0
    %2074 = vmatpush1.msra.mxu0 0.0
    %2075 = vmatprep.subr.mxu0 0.0
    %2076 = vmatpush1.msra.mxu0 0.0
    %2077 = vmatprep.mubr.f32.mxu0 0.0
    %2078 = vmatmul.mubr.f32.gmra.mrb[0].mxu0 %v1916
    %v2079 = vpop.f32.mrb[0].mxu0
    %v2080 = vadd.f32 %v53, %v2079
    %v2081 = vpop.f32.mrb[0].mxu0
    %2082 = vdwg.mxu0
    %2084 = vrot.lane.b32.xlu0 %v1912, 32
    %v2085 = vpop.permute.xlu0 %2084
    %v2086 = vsel %vm199, %v2085, 0
    %2088 = vmatprep.subr.mxu0 0.0
    %2089 = vmatpush1.msra.mxu0 %v43
    %2090 = vmatprep.subr.mxu0 0.0
    %2091 = vmatpush1.msra.mxu0 %v44
    %2092 = vmatprep.subr.mxu0 0.0
    %2093 = vmatpush1.msra.mxu0 %v45
    %2094 = vmatprep.subr.mxu0 0.0
    %2095 = vmatpush1.msra.mxu0 %v46
    %2096 = vmatprep.subr.mxu0 0.0
    %2097 = vmatpush1.msra.mxu0 0.0
    %2098 = vmatprep.subr.mxu0 0.0
    %2099 = vmatpush1.msra.mxu0 0.0
    %2100 = vmatprep.subr.mxu0 0.0
    %2101 = vmatpush1.msra.mxu0 0.0
    %2102 = vmatprep.subr.mxu0 0.0
    %2103 = vmatpush1.msra.mxu0 0.0
    %2104 = vmatprep.subr.mxu0 0.0
    %2105 = vmatpush1.msra.mxu0 0.0
    %2106 = vmatprep.subr.mxu0 0.0
    %2107 = vmatpush1.msra.mxu0 0.0
    %2108 = vmatprep.subr.mxu0 0.0
    %2109 = vmatpush1.msra.mxu0 0.0
    %2110 = vmatprep.subr.mxu0 0.0
    %2111 = vmatpush1.msra.mxu0 0.0
    %2112 = vmatprep.subr.mxu0 0.0
    %2113 = vmatpush1.msra.mxu0 0.0
    %2114 = vmatprep.subr.mxu0 0.0
    %2115 = vmatpush1.msra.mxu0 0.0
    %2116 = vmatprep.subr.mxu0 0.0
    %2117 = vmatpush1.msra.mxu0 0.0
    %2118 = vmatprep.subr.mxu0 0.0
    %2119 = vmatpush1.msra.mxu0 0.0
    %2120 = vmatprep.subr.mxu0 0.0
    %2121 = vmatpush1.msra.mxu0 0.0
    %2122 = vmatprep.subr.mxu0 0.0
    %2123 = vmatpush1.msra.mxu0 0.0
    %2124 = vmatprep.subr.mxu0 0.0
    %2125 = vmatpush1.msra.mxu0 0.0
    %2126 = vmatprep.subr.mxu0 0.0
    %2127 = vmatpush1.msra.mxu0 0.0
    %2128 = vmatprep.subr.mxu0 0.0
    %2129 = vmatpush1.msra.mxu0 0.0
    %2130 = vmatprep.subr.mxu0 0.0
    %2131 = vmatpush1.msra.mxu0 0.0
    %2132 = vmatprep.subr.mxu0 0.0
    %2133 = vmatpush1.msra.mxu0 0.0
    %2134 = vmatprep.subr.mxu0 0.0
    %2135 = vmatpush1.msra.mxu0 0.0
    %2136 = vmatprep.subr.mxu0 0.0
    %2137 = vmatpush1.msra.mxu0 0.0
    %2138 = vmatprep.subr.mxu0 0.0
    %2139 = vmatpush1.msra.mxu0 0.0
    %2140 = vmatprep.subr.mxu0 0.0
    %2141 = vmatpush1.msra.mxu0 0.0
    %2142 = vmatprep.subr.mxu0 0.0
    %2143 = vmatpush1.msra.mxu0 0.0
    %2144 = vmatprep.subr.mxu0 0.0
    %2145 = vmatpush1.msra.mxu0 0.0
    %2146 = vmatprep.subr.mxu0 0.0
    %2147 = vmatpush1.msra.mxu0 0.0
    %2148 = vmatprep.subr.mxu0 0.0
    %2149 = vmatpush1.msra.mxu0 0.0
    %2150 = vmatprep.subr.mxu0 0.0
    %2151 = vmatpush1.msra.mxu0 0.0
    %2152 = vmatprep.mubr.f32.mxu0 0.0
    %2153 = vmatmul.mubr.f32.gmra.mrb[0].mxu0 %v2086
    %v2154 = vpop.f32.mrb[0].mxu0
    %v2155 = vadd.f32 0.0, %v2154
    %v2156 = vpop.f32.mrb[0].mxu0
    %2157 = vdwg.mxu0
    %v2158 = vadd.f32 %v2080, %v2155
    %v2159 = vxor.u32 %v2158, 2147483648
    %v2160 = vmul.f32 %v2159, 1.442695
    %v2161 = vpow.pop %v2160
    %v2162 = vadd.f32 %v2161, 1.0
    %v2163 = vrcp.pop %v2162
    %v2164 = vmul.f32 1.0, %v2163
    %v2165 = vtanh.pop %v2158
    %v2166 = vmul.f32 %v2164, %v1906
    %2168 = vrot.lane.b32.xlu0 %v2165, 64
    %v2169 = vpop.permute.xlu0 %2168
    %v2171 = vmul.f32 %v2164, %v2169
    %2173 = vrot.lane.b32.xlu0 %v2171, 32
    %v2174 = vpop.permute.xlu0 %2173
    %v2176 = vadd.f32 %v2166, %v2174
    %v2177 = vtanh.pop %v2176
    %2179 = vrot.lane.b32.xlu0 %v2177, 64
    %v2180 = vpop.permute.xlu0 %2179
    %v2182 = vmul.f32 %v2164, %v2180
    %2184 = vrot.lane.b32.xlu0 %v2012, 32
    %v2185 = vpop.permute.xlu0 %2184
    %v2186 = vsel %vm199, %v2185, 0
    %2188 = vmatprep.subr.mxu0 0.0
    %2189 = vmatpush1.msra.mxu0 %v35
    %2190 = vmatprep.subr.mxu0 0.0
    %2191 = vmatpush1.msra.mxu0 %v36
    %2192 = vmatprep.subr.mxu0 0.0
    %2193 = vmatpush1.msra.mxu0 %v37
    %2194 = vmatprep.subr.mxu0 0.0
    %2195 = vmatpush1.msra.mxu0 %v38
    %2196 = vmatprep.subr.mxu0 0.0
    %2197 = vmatpush1.msra.mxu0 0.0
    %2198 = vmatprep.subr.mxu0 0.0
    %2199 = vmatpush1.msra.mxu0 0.0
    %2200 = vmatprep.subr.mxu0 0.0
    %2201 = vmatpush1.msra.mxu0 0.0
    %2202 = vmatprep.subr.mxu0 0.0
    %2203 = vmatpush1.msra.mxu0 0.0
    %2204 = vmatprep.subr.mxu0 0.0
    %2205 = vmatpush1.msra.mxu0 0.0
    %2206 = vmatprep.subr.mxu0 0.0
    %2207 = vmatpush1.msra.mxu0 0.0
    %2208 = vmatprep.subr.mxu0 0.0
    %2209 = vmatpush1.msra.mxu0 0.0
    %2210 = vmatprep.subr.mxu0 0.0
    %2211 = vmatpush1.msra.mxu0 0.0
    %2212 = vmatprep.subr.mxu0 0.0
    %2213 = vmatpush1.msra.mxu0 0.0
    %2214 = vmatprep.subr.mxu0 0.0
    %2215 = vmatpush1.msra.mxu0 0.0
    %2216 = vmatprep.subr.mxu0 0.0
    %2217 = vmatpush1.msra.mxu0 0.0
    %2218 = vmatprep.subr.mxu0 0.0
    %2219 = vmatpush1.msra.mxu0 0.0
    %2220 = vmatprep.subr.mxu0 0.0
    %2221 = vmatpush1.msra.mxu0 0.0
    %2222 = vmatprep.subr.mxu0 0.0
    %2223 = vmatpush1.msra.mxu0 0.0
    %2224 = vmatprep.subr.mxu0 0.0
    %2225 = vmatpush1.msra.mxu0 0.0
    %2226 = vmatprep.subr.mxu0 0.0
    %2227 = vmatpush1.msra.mxu0 0.0
    %2228 = vmatprep.subr.mxu0 0.0
    %2229 = vmatpush1.msra.mxu0 0.0
    %2230 = vmatprep.subr.mxu0 0.0
    %2231 = vmatpush1.msra.mxu0 0.0
    %2232 = vmatprep.subr.mxu0 0.0
    %2233 = vmatpush1.msra.mxu0 0.0
    %2234 = vmatprep.subr.mxu0 0.0
    %2235 = vmatpush1.msra.mxu0 0.0
    %2236 = vmatprep.subr.mxu0 0.0
    %2237 = vmatpush1.msra.mxu0 0.0
    %2238 = vmatprep.subr.mxu0 0.0
    %2239 = vmatpush1.msra.mxu0 0.0
    %2240 = vmatprep.subr.mxu0 0.0
    %2241 = vmatpush1.msra.mxu0 0.0
    %2242 = vmatprep.subr.mxu0 0.0
    %2243 = vmatpush1.msra.mxu0 0.0
    %2244 = vmatprep.subr.mxu0 0.0
    %2245 = vmatpush1.msra.mxu0 0.0
    %2246 = vmatprep.subr.mxu0 0.0
    %2247 = vmatpush1.msra.mxu0 0.0
    %2248 = vmatprep.subr.mxu0 0.0
    %2249 = vmatpush1.msra.mxu0 0.0
    %2250 = vmatprep.subr.mxu0 0.0
    %2251 = vmatpush1.msra.mxu0 0.0
    %2252 = vmatprep.mubr.f32.mxu0 0.0
    %2253 = vmatmul.mubr.f32.gmra.mrb[0].mxu0 %v2186
    %v2254 = vpop.f32.mrb[0].mxu0
    %v2255 = vadd.f32 %v53, %v2254
    %v2256 = vpop.f32.mrb[0].mxu0
    %2257 = vdwg.mxu0
    %2259 = vrot.lane.b32.xlu0 %v2182, 32
    %v2260 = vpop.permute.xlu0 %2259
    %v2261 = vsel %vm199, %v2260, 0
    %2263 = vmatprep.subr.mxu0 0.0
    %2264 = vmatpush1.msra.mxu0 %v43
    %2265 = vmatprep.subr.mxu0 0.0
    %2266 = vmatpush1.msra.mxu0 %v44
    %2267 = vmatprep.subr.mxu0 0.0
    %2268 = vmatpush1.msra.mxu0 %v45
    %2269 = vmatprep.subr.mxu0 0.0
    %2270 = vmatpush1.msra.mxu0 %v46
    %2271 = vmatprep.subr.mxu0 0.0
    %2272 = vmatpush1.msra.mxu0 0.0
    %2273 = vmatprep.subr.mxu0 0.0
    %2274 = vmatpush1.msra.mxu0 0.0
    %2275 = vmatprep.subr.mxu0 0.0
    %2276 = vmatpush1.msra.mxu0 0.0
    %2277 = vmatprep.subr.mxu0 0.0
    %2278 = vmatpush1.msra.mxu0 0.0
    %2279 = vmatprep.subr.mxu0 0.0
    %2280 = vmatpush1.msra.mxu0 0.0
    %2281 = vmatprep.subr.mxu0 0.0
    %2282 = vmatpush1.msra.mxu0 0.0
    %2283 = vmatprep.subr.mxu0 0.0
    %2284 = vmatpush1.msra.mxu0 0.0
    %2285 = vmatprep.subr.mxu0 0.0
    %2286 = vmatpush1.msra.mxu0 0.0
    %2287 = vmatprep.subr.mxu0 0.0
    %2288 = vmatpush1.msra.mxu0 0.0
    %2289 = vmatprep.subr.mxu0 0.0
    %2290 = vmatpush1.msra.mxu0 0.0
    %2291 = vmatprep.subr.mxu0 0.0
    %2292 = vmatpush1.msra.mxu0 0.0
    %2293 = vmatprep.subr.mxu0 0.0
    %2294 = vmatpush1.msra.mxu0 0.0
    %2295 = vmatprep.subr.mxu0 0.0
    %2296 = vmatpush1.msra.mxu0 0.0
    %2297 = vmatprep.subr.mxu0 0.0
    %2298 = vmatpush1.msra.mxu0 0.0
    %2299 = vmatprep.subr.mxu0 0.0
    %2300 = vmatpush1.msra.mxu0 0.0
    %2301 = vmatprep.subr.mxu0 0.0
    %2302 = vmatpush1.msra.mxu0 0.0
    %2303 = vmatprep.subr.mxu0 0.0
    %2304 = vmatpush1.msra.mxu0 0.0
    %2305 = vmatprep.subr.mxu0 0.0
    %2306 = vmatpush1.msra.mxu0 0.0
    %2307 = vmatprep.subr.mxu0 0.0
    %2308 = vmatpush1.msra.mxu0 0.0
    %2309 = vmatprep.subr.mxu0 0.0
    %2310 = vmatpush1.msra.mxu0 0.0
    %2311 = vmatprep.subr.mxu0 0.0
    %2312 = vmatpush1.msra.mxu0 0.0
    %2313 = vmatprep.subr.mxu0 0.0
    %2314 = vmatpush1.msra.mxu0 0.0
    %2315 = vmatprep.subr.mxu0 0.0
    %2316 = vmatpush1.msra.mxu0 0.0
    %2317 = vmatprep.subr.mxu0 0.0
    %2318 = vmatpush1.msra.mxu0 0.0
    %2319 = vmatprep.subr.mxu0 0.0
    %2320 = vmatpush1.msra.mxu0 0.0
    %2321 = vmatprep.subr.mxu0 0.0
    %2322 = vmatpush1.msra.mxu0 0.0
    %2323 = vmatprep.subr.mxu0 0.0
    %2324 = vmatpush1.msra.mxu0 0.0
    %2325 = vmatprep.subr.mxu0 0.0
    %2326 = vmatpush1.msra.mxu0 0.0
    %2327 = vmatprep.mubr.f32.mxu0 0.0
    %2328 = vmatmul.mubr.f32.gmra.mrb[0].mxu0 %v2261
    %v2329 = vpop.f32.mrb[0].mxu0
    %v2330 = vadd.f32 0.0, %v2329
    %v2331 = vpop.f32.mrb[0].mxu0
    %2332 = vdwg.mxu0
    %v2333 = vadd.f32 %v2255, %v2330
    %v2334 = vxor.u32 %v2333, 2147483648
    %v2335 = vmul.f32 %v2334, 1.442695
    %v2336 = vpow.pop %v2335
    %v2337 = vadd.f32 %v2336, 1.0
    %v2338 = vrcp.pop %v2337
    %v2339 = vmul.f32 1.0, %v2338
    %v2340 = vtanh.pop %v2333
    %v2341 = vmul.f32 %v2339, %v2176
    %2343 = vrot.lane.b32.xlu0 %v2340, 64
    %v2344 = vpop.permute.xlu0 %2343
    %v2346 = vmul.f32 %v2339, %v2344
    %2348 = vrot.lane.b32.xlu0 %v2346, 32
    %v2349 = vpop.permute.xlu0 %2348
    %v2351 = vadd.f32 %v2341, %v2349
    %v2352 = vtanh.pop %v2351
    %2354 = vrot.lane.b32.xlu0 %v2352, 64
    %v2355 = vpop.permute.xlu0 %2354
    %v2357 = vmul.f32 %v2339, %v2355
    %v2358 = vld [vmem:[%s7] sm:$0xff]
    %v2359 = vld [vmem:[%s7 + $0x8] sm:$0xff]
    %v2360 = vld [vmem:[%s7 + $0x10] sm:$0xff]
    %v2361 = vld [vmem:[%s7 + $0x18] sm:$0xff]
    %v2362 = vld [vmem:[%s8] sm:$0x1]
    %v2364 = vlaneseq
    %v2365 = vshrl.u32 %v2364, 7
    %v2366 = vsub.s32 0, %v2365
    %v2367 = vrot.slane %v2362, %v2366
    %2370 = vrot.lane.b32.xlu0 %v2357, 32
    %v2371 = vpop.permute.xlu0 %2370
    %v2372 = vsel %vm199, %v2371, 0
    %2374 = vmatprep.subr.mxu0 0.0
    %2375 = vmatpush1.msra.mxu0 %v2358
    %2376 = vmatprep.subr.mxu0 0.0
    %2377 = vmatpush1.msra.mxu0 %v2359
    %2378 = vmatprep.subr.mxu0 0.0
    %2379 = vmatpush1.msra.mxu0 %v2360
    %2380 = vmatprep.subr.mxu0 0.0
    %2381 = vmatpush1.msra.mxu0 %v2361
    %2382 = vmatprep.subr.mxu0 0.0
    %2383 = vmatpush1.msra.mxu0 0.0
    %2384 = vmatprep.subr.mxu0 0.0
    %2385 = vmatpush1.msra.mxu0 0.0
    %2386 = vmatprep.subr.mxu0 0.0
    %2387 = vmatpush1.msra.mxu0 0.0
    %2388 = vmatprep.subr.mxu0 0.0
    %2389 = vmatpush1.msra.mxu0 0.0
    %2390 = vmatprep.subr.mxu0 0.0
    %2391 = vmatpush1.msra.mxu0 0.0
    %2392 = vmatprep.subr.mxu0 0.0
    %2393 = vmatpush1.msra.mxu0 0.0
    %2394 = vmatprep.subr.mxu0 0.0
    %2395 = vmatpush1.msra.mxu0 0.0
    %2396 = vmatprep.subr.mxu0 0.0
    %2397 = vmatpush1.msra.mxu0 0.0
    %2398 = vmatprep.subr.mxu0 0.0
    %2399 = vmatpush1.msra.mxu0 0.0
    %2400 = vmatprep.subr.mxu0 0.0
    %2401 = vmatpush1.msra.mxu0 0.0
    %2402 = vmatprep.subr.mxu0 0.0
    %2403 = vmatpush1.msra.mxu0 0.0
    %2404 = vmatprep.subr.mxu0 0.0
    %2405 = vmatpush1.msra.mxu0 0.0
    %2406 = vmatprep.subr.mxu0 0.0
    %2407 = vmatpush1.msra.mxu0 0.0
    %2408 = vmatprep.subr.mxu0 0.0
    %2409 = vmatpush1.msra.mxu0 0.0
    %2410 = vmatprep.subr.mxu0 0.0
    %2411 = vmatpush1.msra.mxu0 0.0
    %2412 = vmatprep.subr.mxu0 0.0
    %2413 = vmatpush1.msra.mxu0 0.0
    %2414 = vmatprep.subr.mxu0 0.0
    %2415 = vmatpush1.msra.mxu0 0.0
    %2416 = vmatprep.subr.mxu0 0.0
    %2417 = vmatpush1.msra.mxu0 0.0
    %2418 = vmatprep.subr.mxu0 0.0
    %2419 = vmatpush1.msra.mxu0 0.0
    %2420 = vmatprep.subr.mxu0 0.0
    %2421 = vmatpush1.msra.mxu0 0.0
    %2422 = vmatprep.subr.mxu0 0.0
    %2423 = vmatpush1.msra.mxu0 0.0
    %2424 = vmatprep.subr.mxu0 0.0
    %2425 = vmatpush1.msra.mxu0 0.0
    %2426 = vmatprep.subr.mxu0 0.0
    %2427 = vmatpush1.msra.mxu0 0.0
    %2428 = vmatprep.subr.mxu0 0.0
    %2429 = vmatpush1.msra.mxu0 0.0
    %2430 = vmatprep.subr.mxu0 0.0
    %2431 = vmatpush1.msra.mxu0 0.0
    %2432 = vmatprep.subr.mxu0 0.0
    %2433 = vmatpush1.msra.mxu0 0.0
    %2434 = vmatprep.subr.mxu0 0.0
    %2435 = vmatpush1.msra.mxu0 0.0
    %2436 = vmatprep.subr.mxu0 0.0
    %2437 = vmatpush1.msra.mxu0 0.0
    %2438 = vmatprep.mubr.f32.mxu0 0.0
    %2439 = vmatmul.mubr.f32.gmra.mrb[0].mxu0 %v2372
    %v2440 = vpop.f32.mrb[0].mxu0
    %v2441 = vadd.f32 %v2367, %v2440
    %v2442 = vpop.f32.mrb[0].mxu0
    %2443 = vdwg.mxu0
    %vm2444 = vcmask 64512
    %2445 = vst.msk [vmem:[#allocation2] sm:$0xff] %vm2444, %v2441
    // Predicated region
    $region38: #{rnn_forward.1} parent=1 // pred_check
      _
    $region39: #{rnn_forward.1} parent=1 // pred_check_branch
      %2447 = sbr.rel (0) target = $region41
    $region40: #{rnn_forward.1} parent=1 // pred_region
      %s2449 = ssub.s32 128, 128
      %2450 = vsyncadd [#allocation3], %s2449
      %s2452 = sshll.u32 [#allocation2], 4
      %s2453 = int_to_ptr.vmem [resolvable:$true] %s2452
      %2455 = dma.vmem_to_hbm [thread:$0]  %s2453, 128, %s9, [#allocation3]
    $region41: #{rnn_forward.1} parent=1 // pred_fallthru
      _
    // Predicated region
    $region42: #{rnn_forward.1} parent=1 // pred_check
      _
    $region43: #{rnn_forward.1} parent=1 // pred_check_branch
      %2457 = sbr.rel (0) target = $region45
    $region44: #{rnn_forward.1} parent=1 // pred_region
      %2458 = dma.done [#allocation3], 128
    $region45: #{rnn_forward.1} parent=1 // pred_fallthru
      _
    %2459 = vsyncpa [#allocation3], 1

</llo_original>
